<compile_context>
chip_gen: v5e
topology: v5e:2x2
jax: 0.10.0
libtpu: 0.0.40
codegen_flags: <defaults>
</compile_context>

<pallas_src>
import functools

import numpy as np
import jax
import jax.numpy as jnp
from jax.experimental import pallas as pl
from jax.experimental.pallas import tpu as pltpu


# ----------------------------------------------------------------------------
# Pallas kernel: entire encoder forward (all layers, whole batch), one step.
# ----------------------------------------------------------------------------
def fused_encoder_kernel(x_ref, pos_ref,
                         wqkv_ref, bqkv_ref, wo_ref, bo_ref,
                         ln1_g_ref, ln1_b_ref, ln2_g_ref, ln2_b_ref,
                         w1_ref, b1_ref, w2_ref, b2_ref,
                         out_ref, *, n_layer, num_heads, eps, batch, seq):
    N, D = x_ref.shape                      # N = batch * seq, flat row slab
    H = num_heads
    dh = D // H
    B, S = batch, seq
    scale = 1.0 / float(np.sqrt(dh))

    # --- embedding scale + positional encoding (dropout = identity) --------
    x = x_ref[...] * float(np.sqrt(D)) + pos_ref[...]          # (N, D) f32

    def layernorm(y, g, b):
        mu = jnp.mean(y, axis=-1, keepdims=True)
        var = jnp.mean((y - mu) ** 2, axis=-1, keepdims=True)
        return (y - mu) * jax.lax.rsqrt(var + eps) * g + b

    for l in range(n_layer):                 # static unroll, n_layer is small
        # ---- fused QKV projection: one MXU op instead of three ------------
        qkv = jnp.dot(x.astype(jnp.bfloat16), wqkv_ref[l],
                      preferred_element_type=jnp.float32) + bqkv_ref[l]  # (N,3D)
        wo_l = wo_ref[l]                                       # (H, dh, D) bf16

        # ---- multi-head self-attention, batched over B per head -----------
        attn = jnp.zeros((N, D), jnp.float32)
        for h in range(H):                   # static loop over heads (small H)
            qh = qkv[:, 0 * D + h * dh: 0 * D + (h + 1) * dh] \
                .reshape(B, S, dh).astype(jnp.bfloat16)
            kh = qkv[:, 1 * D + h * dh: 1 * D + (h + 1) * dh] \
                .reshape(B, S, dh).astype(jnp.bfloat16)
            vh = qkv[:, 2 * D + h * dh: 2 * D + (h + 1) * dh] \
                .reshape(B, S, dh).astype(jnp.bfloat16)

            s = jnp.einsum('bqd,bkd->bqk', qh, kh,
                           preferred_element_type=jnp.float32) * scale  # (B,S,S)
            s = s - jnp.max(s, axis=-1, keepdims=True)
            p = jnp.exp(s)
            p = p * pl.reciprocal(jnp.sum(p, axis=-1, keepdims=True), approx=True)
            oh = jnp.einsum('bqk,bkd->bqd', p.astype(jnp.bfloat16), vh,
                            preferred_element_type=jnp.float32)         # (B,S,dh)

            # fold the output projection per head -> no concatenate
            attn = attn + jnp.dot(oh.reshape(N, dh).astype(jnp.bfloat16),
                                  wo_l[h], preferred_element_type=jnp.float32)
        attn = attn + bo_ref[l]
        # dropout: identity at inference
        x = layernorm(x + attn, ln1_g_ref[l], ln1_b_ref[l])

        # ---- feed-forward --------------------------------------------------
        h1 = jnp.dot(x.astype(jnp.bfloat16), w1_ref[l],
                     preferred_element_type=jnp.float32) + b1_ref[l]
        h1 = jnp.maximum(h1, 0.0)                              # relu
        ffn = jnp.dot(h1.astype(jnp.bfloat16), w2_ref[l],
                      preferred_element_type=jnp.float32) + b2_ref[l]
        # dropout: identity at inference
        x = layernorm(x + ffn, ln2_g_ref[l], ln2_b_ref[l])

    out_ref[...] = x                          # (N, D) flat slab


_STACK_ORDER = ("wqkv", "bqkv", "wo", "bo",
                "ln1_g", "ln1_b", "ln2_g", "ln2_b",
                "w1", "b1", "w2", "b2")


@functools.partial(jax.jit, static_argnames=("num_heads", "n_layer", "eps"))
def encoder_forward(tokens, embedding, pos_enc, stacked, *,
                    num_heads, n_layer, eps):
    """tokens: (B,S) int32; embedding: (V,D) f32; pos_enc: (1,P,D) f32."""
    B, S = tokens.shape
    D = embedding.shape[1]
    # Embedding gather + flattening / broadcasting is cheap XLA glue so the
    # kernel sees plain (B*S, D) slabs and performs no internal reshapes.
    x = embedding[tokens].reshape(B * S, D)                     # (B*S, D)
    pos = jnp.broadcast_to(pos_enc[0, :S, :], (B, S, D)).reshape(B * S, D)

    kernel = functools.partial(fused_encoder_kernel, n_layer=n_layer,
                               num_heads=num_heads, eps=eps, batch=B, seq=S)
    n_inputs = 2 + len(_STACK_ORDER)
    out = pl.pallas_call(
        kernel,
        out_shape=jax.ShapeDtypeStruct((B * S, D), jnp.float32),
        in_specs=[pl.BlockSpec(memory_space=pltpu.MemorySpace.VMEM)] * n_inputs,
        out_specs=pl.BlockSpec(memory_space=pltpu.MemorySpace.VMEM),
    )(x, pos, *[stacked[k] for k in _STACK_ORDER])
    return out.reshape(B, S, D)


# ----------------------------------------------------------------------------
# Glue: positional encoding / parameter construction.
# ----------------------------------------------------------------------------
def positional_encoding(position, d_model):
    pos = np.arange(position, dtype=np.float32)[:, None]
    i = np.arange(d_model, dtype=np.float32)[None, :]
    angle_rates = 1.0 / np.power(10000.0,
                                 (2.0 * np.floor(i / 2.0)) / np.float32(d_model))
    angle_rads = pos * angle_rates
    angle_rads[:, 0::2] = np.sin(angle_rads[:, 0::2])
    angle_rads[:, 1::2] = np.cos(angle_rads[:, 1::2])
    return jnp.asarray(angle_rads[None, ...], dtype=jnp.float32)    # (1, P, D)


def init_layer_params(key, d_model, dff, num_heads):
    dh = d_model // num_heads
    ks = jax.random.split(key, 6)
    std = 0.02
    wq = std * jax.random.normal(ks[0], (d_model, d_model), jnp.float32)
    wk = std * jax.random.normal(ks[1], (d_model, d_model), jnp.float32)
    wv = std * jax.random.normal(ks[2], (d_model, d_model), jnp.float32)
    wo = std * jax.random.normal(ks[3], (d_model, d_model), jnp.float32)
    w1 = std * jax.random.normal(ks[4], (d_model, dff), jnp.float32)
    w2 = std * jax.random.normal(ks[5], (dff, d_model), jnp.float32)
    return {
        # matmul weights stored in bf16 (MXU operands); accumulation is f32.
        "wqkv": jnp.concatenate([wq, wk, wv], axis=1).astype(jnp.bfloat16),
        "bqkv": jnp.zeros((1, 3 * d_model), jnp.float32),
        "wo": wo.reshape(num_heads, dh, d_model).astype(jnp.bfloat16),
        "bo": jnp.zeros((1, d_model), jnp.float32),
        "ln1_g": jnp.ones((1, d_model), jnp.float32),
        "ln1_b": jnp.zeros((1, d_model), jnp.float32),
        "ln2_g": jnp.ones((1, d_model), jnp.float32),
        "ln2_b": jnp.zeros((1, d_model), jnp.float32),
        "w1": w1.astype(jnp.bfloat16),
        "b1": jnp.zeros((1, dff), jnp.float32),
        "w2": w2.astype(jnp.bfloat16),
        "b2": jnp.zeros((1, d_model), jnp.float32),
    }


def stack_layer_params(layer_params):
    return {k: jnp.stack([p[k] for p in layer_params])
            for k in layer_params[0]}


# ----------------------------------------------------------------------------
if __name__ == "__main__":
    n_layer, d_model, num_heads, dff = 2, 32, 4, 64
    input_vocab_size, maximum_position_encoding = 100, 64
    eps = 1e-6
    B, S = 2, 8

    key = jax.random.PRNGKey(0)
    k_emb, k_tok, *k_layers = jax.random.split(key, 2 + n_layer)

    embedding = 0.02 * jax.random.normal(
        k_emb, (input_vocab_size, d_model), jnp.float32)
    pos_enc = positional_encoding(maximum_position_encoding, d_model)
    layer_params = [init_layer_params(k, d_model, dff, num_heads)
                    for k in k_layers]
    stacked = stack_layer_params(layer_params)

    tokens = jax.random.randint(k_tok, (B, S), 0, input_vocab_size,
                                dtype=jnp.int32)

    out = encoder_forward(tokens, embedding, pos_enc, stacked,
                          num_heads=num_heads, n_layer=n_layer, eps=eps)
    jax.block_until_ready(out)
    assert out.shape == (B, S, d_model)
    assert bool(jnp.all(jnp.isfinite(out)))
    print("KERNEL_OK")
</pallas_src>

<mosaic_0001>
module attributes {stable_mosaic.version = 11 : i64} {
  func.func @fused_encoder_kernel(%arg0: memref<16x32xf32, #tpu.memory_space<vmem>>, %arg1: memref<16x32xf32, #tpu.memory_space<vmem>>, %arg2: memref<2x32x96xbf16, #tpu.memory_space<vmem>>, %arg3: memref<2x1x96xf32, #tpu.memory_space<vmem>>, %arg4: memref<2x4x8x32xbf16, #tpu.memory_space<vmem>>, %arg5: memref<2x1x32xf32, #tpu.memory_space<vmem>>, %arg6: memref<2x1x32xf32, #tpu.memory_space<vmem>>, %arg7: memref<2x1x32xf32, #tpu.memory_space<vmem>>, %arg8: memref<2x1x32xf32, #tpu.memory_space<vmem>>, %arg9: memref<2x1x32xf32, #tpu.memory_space<vmem>>, %arg10: memref<2x32x64xbf16, #tpu.memory_space<vmem>>, %arg11: memref<2x1x64xf32, #tpu.memory_space<vmem>>, %arg12: memref<2x64x32xbf16, #tpu.memory_space<vmem>>, %arg13: memref<2x1x32xf32, #tpu.memory_space<vmem>>, %arg14: memref<16x32xf32, #tpu.memory_space<vmem>>) attributes {dimension_semantics = [], scalar_prefetch = 0 : i64, scratch_operands = 0 : i64, tpu.core_type = #tpu.core_type<tc>} {
    %c0 = arith.constant 0 : index
    %c0_0 = arith.constant 0 : index
    %0 = vector.load %arg0[%c0, %c0_0] : memref<16x32xf32, #tpu.memory_space<vmem>>, vector<16x32xf32>
    %cst = arith.constant 5.65685415 : f32
    %1 = vector.broadcast %cst : f32 to vector<16x32xf32>
    %2 = arith.mulf %0, %1 : vector<16x32xf32>
    %c0_1 = arith.constant 0 : index
    %c0_2 = arith.constant 0 : index
    %3 = vector.load %arg1[%c0_1, %c0_2] : memref<16x32xf32, #tpu.memory_space<vmem>>, vector<16x32xf32>
    %4 = arith.addf %2, %3 : vector<16x32xf32>
    %5 = arith.truncf %4 : vector<16x32xf32> to vector<16x32xbf16>
    %c0_3 = arith.constant 0 : index
    %c0_4 = arith.constant 0 : index
    %c0_5 = arith.constant 0 : index
    %6 = vector.load %arg2[%c0_3, %c0_4, %c0_5] : memref<2x32x96xbf16, #tpu.memory_space<vmem>>, vector<1x32x96xbf16>
    %7 = vector.shape_cast %6 : vector<1x32x96xbf16> to vector<32x96xbf16>
    %cst_6 = arith.constant dense<0.000000e+00> : vector<16x96xf32>
    %8 = tpu.matmul %5, %7, %cst_6 {dimension_numbers = #tpu.dot_dimension_numbers<[1], [0], [0], [1], [0, 0, 1, 1], [], []>} : vector<16x32xbf16>, vector<32x96xbf16>, vector<16x96xf32> -> vector<16x96xf32>
    %c0_7 = arith.constant 0 : index
    %c0_8 = arith.constant 0 : index
    %c0_9 = arith.constant 0 : index
    %9 = vector.load %arg3[%c0_7, %c0_8, %c0_9] : memref<2x1x96xf32, #tpu.memory_space<vmem>>, vector<1x1x96xf32>
    %10 = vector.shape_cast %9 : vector<1x1x96xf32> to vector<1x96xf32>
    %11 = vector.broadcast %10 : vector<1x96xf32> to vector<16x96xf32>
    %12 = arith.addf %8, %11 : vector<16x96xf32>
    %c0_10 = arith.constant 0 : index
    %c0_11 = arith.constant 0 : index
    %c0_12 = arith.constant 0 : index
    %c0_13 = arith.constant 0 : index
    %13 = vector.load %arg4[%c0_10, %c0_11, %c0_12, %c0_13] : memref<2x4x8x32xbf16, #tpu.memory_space<vmem>>, vector<1x4x8x32xbf16>
    %14 = vector.shape_cast %13 : vector<1x4x8x32xbf16> to vector<4x8x32xbf16>
    %cst_14 = arith.constant 0.000000e+00 : f32
    %15 = vector.broadcast %cst_14 : f32 to vector<16x32xf32>
    %16 = vector.extract_strided_slice %12 {offsets = [0, 0], sizes = [16, 8], strides = [1, 1]} : vector<16x96xf32> to vector<16x8xf32>
    %17 = vector.shape_cast %16 : vector<16x8xf32> to vector<2x8x8xf32>
    %18 = arith.truncf %17 : vector<2x8x8xf32> to vector<2x8x8xbf16>
    %19 = vector.extract_strided_slice %12 {offsets = [0, 32], sizes = [16, 8], strides = [1, 1]} : vector<16x96xf32> to vector<16x8xf32>
    %20 = vector.shape_cast %19 : vector<16x8xf32> to vector<2x8x8xf32>
    %21 = arith.truncf %20 : vector<2x8x8xf32> to vector<2x8x8xbf16>
    %22 = vector.extract_strided_slice %12 {offsets = [0, 64], sizes = [16, 8], strides = [1, 1]} : vector<16x96xf32> to vector<16x8xf32>
    %23 = vector.shape_cast %22 : vector<16x8xf32> to vector<2x8x8xf32>
    %24 = arith.truncf %23 : vector<2x8x8xf32> to vector<2x8x8xbf16>
    "tpu.trace_start"() <{level = 10 : i32, message = "bqd,bkd->bqk"}> : () -> ()
    %cst_15 = arith.constant dense<0.000000e+00> : vector<2x8x8xf32>
    %25 = tpu.matmul %18, %21, %cst_15 {dimension_numbers = #tpu.dot_dimension_numbers<[2], [2], [1], [1], [0, 0, 0, 1, 1, 1], [0], [0]>} : vector<2x8x8xbf16>, vector<2x8x8xbf16>, vector<2x8x8xf32> -> vector<2x8x8xf32>
    "tpu.trace_stop"() : () -> ()
    %cst_16 = arith.constant 0.353553385 : f32
    %26 = vector.broadcast %cst_16 : f32 to vector<2x8x8xf32>
    %27 = arith.mulf %25, %26 : vector<2x8x8xf32>
    %cst_17 = arith.constant dense<0xFF800000> : vector<2x8xf32>
    %28 = vector.multi_reduction <maximumf>, %27, %cst_17 [2] : vector<2x8x8xf32> to vector<2x8xf32>
    %29 = vector.shape_cast %28 : vector<2x8xf32> to vector<2x8x1xf32>
    %30 = vector.broadcast %29 : vector<2x8x1xf32> to vector<2x8x8xf32>
    %31 = arith.subf %27, %30 : vector<2x8x8xf32>
    %32 = math.exp %31 : vector<2x8x8xf32>
    %cst_18 = arith.constant dense<0.000000e+00> : vector<2x8xf32>
    %33 = vector.multi_reduction <add>, %32, %cst_18 [2] : vector<2x8x8xf32> to vector<2x8xf32>
    %34 = vector.shape_cast %33 : vector<2x8xf32> to vector<2x8x1xf32>
    %35 = tpu.reciprocal %34 {approx = true} : vector<2x8x1xf32> -> vector<2x8x1xf32>
    %36 = vector.broadcast %35 : vector<2x8x1xf32> to vector<2x8x8xf32>
    %37 = arith.mulf %32, %36 : vector<2x8x8xf32>
    %38 = arith.truncf %37 : vector<2x8x8xf32> to vector<2x8x8xbf16>
    "tpu.trace_start"() <{level = 10 : i32, message = "bqk,bkd->bqd"}> : () -> ()
    %cst_19 = arith.constant dense<0.000000e+00> : vector<2x8x8xf32>
    %39 = tpu.matmul %38, %24, %cst_19 {dimension_numbers = #tpu.dot_dimension_numbers<[2], [1], [1], [2], [0, 0, 0, 1, 1, 2], [0], [0]>} : vector<2x8x8xbf16>, vector<2x8x8xbf16>, vector<2x8x8xf32> -> vector<2x8x8xf32>
    "tpu.trace_stop"() : () -> ()
    %40 = vector.shape_cast %39 : vector<2x8x8xf32> to vector<16x8xf32>
    %41 = arith.truncf %40 : vector<16x8xf32> to vector<16x8xbf16>
    %42 = vector.extract_strided_slice %14 {offsets = [0, 0, 0], sizes = [1, 8, 32], strides = [1, 1, 1]} : vector<4x8x32xbf16> to vector<1x8x32xbf16>
    %43 = vector.shape_cast %42 : vector<1x8x32xbf16> to vector<8x32xbf16>
    %cst_20 = arith.constant dense<0.000000e+00> : vector<16x32xf32>
    %44 = tpu.matmul %41, %43, %cst_20 {dimension_numbers = #tpu.dot_dimension_numbers<[1], [0], [0], [1], [0, 0, 1, 1], [], []>} : vector<16x8xbf16>, vector<8x32xbf16>, vector<16x32xf32> -> vector<16x32xf32>
    %45 = arith.addf %15, %44 : vector<16x32xf32>
    %46 = vector.extract_strided_slice %12 {offsets = [0, 8], sizes = [16, 8], strides = [1, 1]} : vector<16x96xf32> to vector<16x8xf32>
    %47 = vector.shape_cast %46 : vector<16x8xf32> to vector<2x8x8xf32>
    %48 = arith.truncf %47 : vector<2x8x8xf32> to vector<2x8x8xbf16>
    %49 = vector.extract_strided_slice %12 {offsets = [0, 40], sizes = [16, 8], strides = [1, 1]} : vector<16x96xf32> to vector<16x8xf32>
    %50 = vector.shape_cast %49 : vector<16x8xf32> to vector<2x8x8xf32>
    %51 = arith.truncf %50 : vector<2x8x8xf32> to vector<2x8x8xbf16>
    %52 = vector.extract_strided_slice %12 {offsets = [0, 72], sizes = [16, 8], strides = [1, 1]} : vector<16x96xf32> to vector<16x8xf32>
    %53 = vector.shape_cast %52 : vector<16x8xf32> to vector<2x8x8xf32>
    %54 = arith.truncf %53 : vector<2x8x8xf32> to vector<2x8x8xbf16>
    "tpu.trace_start"() <{level = 10 : i32, message = "bqd,bkd->bqk"}> : () -> ()
    %cst_21 = arith.constant dense<0.000000e+00> : vector<2x8x8xf32>
    %55 = tpu.matmul %48, %51, %cst_21 {dimension_numbers = #tpu.dot_dimension_numbers<[2], [2], [1], [1], [0, 0, 0, 1, 1, 1], [0], [0]>} : vector<2x8x8xbf16>, vector<2x8x8xbf16>, vector<2x8x8xf32> -> vector<2x8x8xf32>
    "tpu.trace_stop"() : () -> ()
    %cst_22 = arith.constant 0.353553385 : f32
    %56 = vector.broadcast %cst_22 : f32 to vector<2x8x8xf32>
    %57 = arith.mulf %55, %56 : vector<2x8x8xf32>
    %cst_23 = arith.constant dense<0xFF800000> : vector<2x8xf32>
    %58 = vector.multi_reduction <maximumf>, %57, %cst_23 [2] : vector<2x8x8xf32> to vector<2x8xf32>
    %59 = vector.shape_cast %58 : vector<2x8xf32> to vector<2x8x1xf32>
    %60 = vector.broadcast %59 : vector<2x8x1xf32> to vector<2x8x8xf32>
    %61 = arith.subf %57, %60 : vector<2x8x8xf32>
    %62 = math.exp %61 : vector<2x8x8xf32>
    %cst_24 = arith.constant dense<0.000000e+00> : vector<2x8xf32>
    %63 = vector.multi_reduction <add>, %62, %cst_24 [2] : vector<2x8x8xf32> to vector<2x8xf32>
    %64 = vector.shape_cast %63 : vector<2x8xf32> to vector<2x8x1xf32>
    %65 = tpu.reciprocal %64 {approx = true} : vector<2x8x1xf32> -> vector<2x8x1xf32>
    %66 = vector.broadcast %65 : vector<2x8x1xf32> to vector<2x8x8xf32>
    %67 = arith.mulf %62, %66 : vector<2x8x8xf32>
    %68 = arith.truncf %67 : vector<2x8x8xf32> to vector<2x8x8xbf16>
    "tpu.trace_start"() <{level = 10 : i32, message = "bqk,bkd->bqd"}> : () -> ()
    %cst_25 = arith.constant dense<0.000000e+00> : vector<2x8x8xf32>
    %69 = tpu.matmul %68, %54, %cst_25 {dimension_numbers = #tpu.dot_dimension_numbers<[2], [1], [1], [2], [0, 0, 0, 1, 1, 2], [0], [0]>} : vector<2x8x8xbf16>, vector<2x8x8xbf16>, vector<2x8x8xf32> -> vector<2x8x8xf32>
    "tpu.trace_stop"() : () -> ()
    %70 = vector.shape_cast %69 : vector<2x8x8xf32> to vector<16x8xf32>
    %71 = arith.truncf %70 : vector<16x8xf32> to vector<16x8xbf16>
    %72 = vector.extract_strided_slice %14 {offsets = [1, 0, 0], sizes = [1, 8, 32], strides = [1, 1, 1]} : vector<4x8x32xbf16> to vector<1x8x32xbf16>
    %73 = vector.shape_cast %72 : vector<1x8x32xbf16> to vector<8x32xbf16>
    %cst_26 = arith.constant dense<0.000000e+00> : vector<16x32xf32>
    %74 = tpu.matmul %71, %73, %cst_26 {dimension_numbers = #tpu.dot_dimension_numbers<[1], [0], [0], [1], [0, 0, 1, 1], [], []>} : vector<16x8xbf16>, vector<8x32xbf16>, vector<16x32xf32> -> vector<16x32xf32>
    %75 = arith.addf %45, %74 : vector<16x32xf32>
    %76 = vector.extract_strided_slice %12 {offsets = [0, 16], sizes = [16, 8], strides = [1, 1]} : vector<16x96xf32> to vector<16x8xf32>
    %77 = vector.shape_cast %76 : vector<16x8xf32> to vector<2x8x8xf32>
    %78 = arith.truncf %77 : vector<2x8x8xf32> to vector<2x8x8xbf16>
    %79 = vector.extract_strided_slice %12 {offsets = [0, 48], sizes = [16, 8], strides = [1, 1]} : vector<16x96xf32> to vector<16x8xf32>
    %80 = vector.shape_cast %79 : vector<16x8xf32> to vector<2x8x8xf32>
    %81 = arith.truncf %80 : vector<2x8x8xf32> to vector<2x8x8xbf16>
    %82 = vector.extract_strided_slice %12 {offsets = [0, 80], sizes = [16, 8], strides = [1, 1]} : vector<16x96xf32> to vector<16x8xf32>
    %83 = vector.shape_cast %82 : vector<16x8xf32> to vector<2x8x8xf32>
    %84 = arith.truncf %83 : vector<2x8x8xf32> to vector<2x8x8xbf16>
    "tpu.trace_start"() <{level = 10 : i32, message = "bqd,bkd->bqk"}> : () -> ()
    %cst_27 = arith.constant dense<0.000000e+00> : vector<2x8x8xf32>
    %85 = tpu.matmul %78, %81, %cst_27 {dimension_numbers = #tpu.dot_dimension_numbers<[2], [2], [1], [1], [0, 0, 0, 1, 1, 1], [0], [0]>} : vector<2x8x8xbf16>, vector<2x8x8xbf16>, vector<2x8x8xf32> -> vector<2x8x8xf32>
    "tpu.trace_stop"() : () -> ()
    %cst_28 = arith.constant 0.353553385 : f32
    %86 = vector.broadcast %cst_28 : f32 to vector<2x8x8xf32>
    %87 = arith.mulf %85, %86 : vector<2x8x8xf32>
    %cst_29 = arith.constant dense<0xFF800000> : vector<2x8xf32>
    %88 = vector.multi_reduction <maximumf>, %87, %cst_29 [2] : vector<2x8x8xf32> to vector<2x8xf32>
    %89 = vector.shape_cast %88 : vector<2x8xf32> to vector<2x8x1xf32>
    %90 = vector.broadcast %89 : vector<2x8x1xf32> to vector<2x8x8xf32>
    %91 = arith.subf %87, %90 : vector<2x8x8xf32>
    %92 = math.exp %91 : vector<2x8x8xf32>
    %cst_30 = arith.constant dense<0.000000e+00> : vector<2x8xf32>
    %93 = vector.multi_reduction <add>, %92, %cst_30 [2] : vector<2x8x8xf32> to vector<2x8xf32>
    %94 = vector.shape_cast %93 : vector<2x8xf32> to vector<2x8x1xf32>
    %95 = tpu.reciprocal %94 {approx = true} : vector<2x8x1xf32> -> vector<2x8x1xf32>
    %96 = vector.broadcast %95 : vector<2x8x1xf32> to vector<2x8x8xf32>
    %97 = arith.mulf %92, %96 : vector<2x8x8xf32>
    %98 = arith.truncf %97 : vector<2x8x8xf32> to vector<2x8x8xbf16>
    "tpu.trace_start"() <{level = 10 : i32, message = "bqk,bkd->bqd"}> : () -> ()
    %cst_31 = arith.constant dense<0.000000e+00> : vector<2x8x8xf32>
    %99 = tpu.matmul %98, %84, %cst_31 {dimension_numbers = #tpu.dot_dimension_numbers<[2], [1], [1], [2], [0, 0, 0, 1, 1, 2], [0], [0]>} : vector<2x8x8xbf16>, vector<2x8x8xbf16>, vector<2x8x8xf32> -> vector<2x8x8xf32>
    "tpu.trace_stop"() : () -> ()
    %100 = vector.shape_cast %99 : vector<2x8x8xf32> to vector<16x8xf32>
    %101 = arith.truncf %100 : vector<16x8xf32> to vector<16x8xbf16>
    %102 = vector.extract_strided_slice %14 {offsets = [2, 0, 0], sizes = [1, 8, 32], strides = [1, 1, 1]} : vector<4x8x32xbf16> to vector<1x8x32xbf16>
    %103 = vector.shape_cast %102 : vector<1x8x32xbf16> to vector<8x32xbf16>
    %cst_32 = arith.constant dense<0.000000e+00> : vector<16x32xf32>
    %104 = tpu.matmul %101, %103, %cst_32 {dimension_numbers = #tpu.dot_dimension_numbers<[1], [0], [0], [1], [0, 0, 1, 1], [], []>} : vector<16x8xbf16>, vector<8x32xbf16>, vector<16x32xf32> -> vector<16x32xf32>
    %105 = arith.addf %75, %104 : vector<16x32xf32>
    %106 = vector.extract_strided_slice %12 {offsets = [0, 24], sizes = [16, 8], strides = [1, 1]} : vector<16x96xf32> to vector<16x8xf32>
    %107 = vector.shape_cast %106 : vector<16x8xf32> to vector<2x8x8xf32>
    %108 = arith.truncf %107 : vector<2x8x8xf32> to vector<2x8x8xbf16>
    %109 = vector.extract_strided_slice %12 {offsets = [0, 56], sizes = [16, 8], strides = [1, 1]} : vector<16x96xf32> to vector<16x8xf32>
    %110 = vector.shape_cast %109 : vector<16x8xf32> to vector<2x8x8xf32>
    %111 = arith.truncf %110 : vector<2x8x8xf32> to vector<2x8x8xbf16>
    %112 = vector.extract_strided_slice %12 {offsets = [0, 88], sizes = [16, 8], strides = [1, 1]} : vector<16x96xf32> to vector<16x8xf32>
    %113 = vector.shape_cast %112 : vector<16x8xf32> to vector<2x8x8xf32>
    %114 = arith.truncf %113 : vector<2x8x8xf32> to vector<2x8x8xbf16>
    "tpu.trace_start"() <{level = 10 : i32, message = "bqd,bkd->bqk"}> : () -> ()
    %cst_33 = arith.constant dense<0.000000e+00> : vector<2x8x8xf32>
    %115 = tpu.matmul %108, %111, %cst_33 {dimension_numbers = #tpu.dot_dimension_numbers<[2], [2], [1], [1], [0, 0, 0, 1, 1, 1], [0], [0]>} : vector<2x8x8xbf16>, vector<2x8x8xbf16>, vector<2x8x8xf32> -> vector<2x8x8xf32>
    "tpu.trace_stop"() : () -> ()
    %cst_34 = arith.constant 0.353553385 : f32
    %116 = vector.broadcast %cst_34 : f32 to vector<2x8x8xf32>
    %117 = arith.mulf %115, %116 : vector<2x8x8xf32>
    %cst_35 = arith.constant dense<0xFF800000> : vector<2x8xf32>
    %118 = vector.multi_reduction <maximumf>, %117, %cst_35 [2] : vector<2x8x8xf32> to vector<2x8xf32>
    %119 = vector.shape_cast %118 : vector<2x8xf32> to vector<2x8x1xf32>
    %120 = vector.broadcast %119 : vector<2x8x1xf32> to vector<2x8x8xf32>
    %121 = arith.subf %117, %120 : vector<2x8x8xf32>
    %122 = math.exp %121 : vector<2x8x8xf32>
    %cst_36 = arith.constant dense<0.000000e+00> : vector<2x8xf32>
    %123 = vector.multi_reduction <add>, %122, %cst_36 [2] : vector<2x8x8xf32> to vector<2x8xf32>
    %124 = vector.shape_cast %123 : vector<2x8xf32> to vector<2x8x1xf32>
    %125 = tpu.reciprocal %124 {approx = true} : vector<2x8x1xf32> -> vector<2x8x1xf32>
    %126 = vector.broadcast %125 : vector<2x8x1xf32> to vector<2x8x8xf32>
    %127 = arith.mulf %122, %126 : vector<2x8x8xf32>
    %128 = arith.truncf %127 : vector<2x8x8xf32> to vector<2x8x8xbf16>
    "tpu.trace_start"() <{level = 10 : i32, message = "bqk,bkd->bqd"}> : () -> ()
    %cst_37 = arith.constant dense<0.000000e+00> : vector<2x8x8xf32>
    %129 = tpu.matmul %128, %114, %cst_37 {dimension_numbers = #tpu.dot_dimension_numbers<[2], [1], [1], [2], [0, 0, 0, 1, 1, 2], [0], [0]>} : vector<2x8x8xbf16>, vector<2x8x8xbf16>, vector<2x8x8xf32> -> vector<2x8x8xf32>
    "tpu.trace_stop"() : () -> ()
    %130 = vector.shape_cast %129 : vector<2x8x8xf32> to vector<16x8xf32>
    %131 = arith.truncf %130 : vector<16x8xf32> to vector<16x8xbf16>
    %132 = vector.extract_strided_slice %14 {offsets = [3, 0, 0], sizes = [1, 8, 32], strides = [1, 1, 1]} : vector<4x8x32xbf16> to vector<1x8x32xbf16>
    %133 = vector.shape_cast %132 : vector<1x8x32xbf16> to vector<8x32xbf16>
    %cst_38 = arith.constant dense<0.000000e+00> : vector<16x32xf32>
    %134 = tpu.matmul %131, %133, %cst_38 {dimension_numbers = #tpu.dot_dimension_numbers<[1], [0], [0], [1], [0, 0, 1, 1], [], []>} : vector<16x8xbf16>, vector<8x32xbf16>, vector<16x32xf32> -> vector<16x32xf32>
    %135 = arith.addf %105, %134 : vector<16x32xf32>
    %c0_39 = arith.constant 0 : index
    %c0_40 = arith.constant 0 : index
    %c0_41 = arith.constant 0 : index
    %136 = vector.load %arg5[%c0_39, %c0_40, %c0_41] : memref<2x1x32xf32, #tpu.memory_space<vmem>>, vector<1x1x32xf32>
    %137 = vector.shape_cast %136 : vector<1x1x32xf32> to vector<1x32xf32>
    %138 = vector.broadcast %137 : vector<1x32xf32> to vector<16x32xf32>
    %139 = arith.addf %135, %138 : vector<16x32xf32>
    %140 = arith.addf %4, %139 : vector<16x32xf32>
    %c0_42 = arith.constant 0 : index
    %c0_43 = arith.constant 0 : index
    %c0_44 = arith.constant 0 : index
    %141 = vector.load %arg6[%c0_42, %c0_43, %c0_44] : memref<2x1x32xf32, #tpu.memory_space<vmem>>, vector<1x1x32xf32>
    %142 = vector.shape_cast %141 : vector<1x1x32xf32> to vector<1x32xf32>
    %c0_45 = arith.constant 0 : index
    %c0_46 = arith.constant 0 : index
    %c0_47 = arith.constant 0 : index
    %143 = vector.load %arg7[%c0_45, %c0_46, %c0_47] : memref<2x1x32xf32, #tpu.memory_space<vmem>>, vector<1x1x32xf32>
    %144 = vector.shape_cast %143 : vector<1x1x32xf32> to vector<1x32xf32>
    %cst_48 = arith.constant dense<0.000000e+00> : vector<16xf32>
    %145 = vector.multi_reduction <add>, %140, %cst_48 [1] : vector<16x32xf32> to vector<16xf32>
    %146 = vector.shape_cast %145 : vector<16xf32> to vector<16x1xf32>
    %cst_49 = arith.constant 3.200000e+01 : f32
    %147 = vector.broadcast %cst_49 : f32 to vector<16x1xf32>
    %148 = arith.divf %146, %147 : vector<16x1xf32>
    %149 = vector.broadcast %148 : vector<16x1xf32> to vector<16x32xf32>
    %150 = arith.subf %140, %149 : vector<16x32xf32>
    %151 = arith.mulf %150, %150 : vector<16x32xf32>
    %cst_50 = arith.constant dense<0.000000e+00> : vector<16xf32>
    %152 = vector.multi_reduction <add>, %151, %cst_50 [1] : vector<16x32xf32> to vector<16xf32>
    %153 = vector.shape_cast %152 : vector<16xf32> to vector<16x1xf32>
    %cst_51 = arith.constant 3.200000e+01 : f32
    %154 = vector.broadcast %cst_51 : f32 to vector<16x1xf32>
    %155 = arith.divf %153, %154 : vector<16x1xf32>
    %156 = vector.broadcast %148 : vector<16x1xf32> to vector<16x32xf32>
    %157 = arith.subf %140, %156 : vector<16x32xf32>
    %cst_52 = arith.constant 9.99999997E-7 : f32
    %158 = vector.broadcast %cst_52 : f32 to vector<16x1xf32>
    %159 = arith.addf %155, %158 : vector<16x1xf32>
    %160 = math.rsqrt %159 : vector<16x1xf32>
    %161 = vector.broadcast %160 : vector<16x1xf32> to vector<16x32xf32>
    %162 = arith.mulf %157, %161 : vector<16x32xf32>
    %163 = vector.broadcast %142 : vector<1x32xf32> to vector<16x32xf32>
    %164 = arith.mulf %162, %163 : vector<16x32xf32>
    %165 = vector.broadcast %144 : vector<1x32xf32> to vector<16x32xf32>
    %166 = arith.addf %164, %165 : vector<16x32xf32>
    %167 = arith.truncf %166 : vector<16x32xf32> to vector<16x32xbf16>
    %c0_53 = arith.constant 0 : index
    %c0_54 = arith.constant 0 : index
    %c0_55 = arith.constant 0 : index
    %168 = vector.load %arg10[%c0_53, %c0_54, %c0_55] : memref<2x32x64xbf16, #tpu.memory_space<vmem>>, vector<1x32x64xbf16>
    %169 = vector.shape_cast %168 : vector<1x32x64xbf16> to vector<32x64xbf16>
    %cst_56 = arith.constant dense<0.000000e+00> : vector<16x64xf32>
    %170 = tpu.matmul %167, %169, %cst_56 {dimension_numbers = #tpu.dot_dimension_numbers<[1], [0], [0], [1], [0, 0, 1, 1], [], []>} : vector<16x32xbf16>, vector<32x64xbf16>, vector<16x64xf32> -> vector<16x64xf32>
    %c0_57 = arith.constant 0 : index
    %c0_58 = arith.constant 0 : index
    %c0_59 = arith.constant 0 : index
    %171 = vector.load %arg11[%c0_57, %c0_58, %c0_59] : memref<2x1x64xf32, #tpu.memory_space<vmem>>, vector<1x1x64xf32>
    %172 = vector.shape_cast %171 : vector<1x1x64xf32> to vector<1x64xf32>
    %173 = vector.broadcast %172 : vector<1x64xf32> to vector<16x64xf32>
    %174 = arith.addf %170, %173 : vector<16x64xf32>
    %cst_60 = arith.constant 0.000000e+00 : f32
    %175 = vector.broadcast %cst_60 : f32 to vector<16x64xf32>
    %176 = arith.maximumf %174, %175 : vector<16x64xf32>
    %177 = arith.truncf %176 : vector<16x64xf32> to vector<16x64xbf16>
    %c0_61 = arith.constant 0 : index
    %c0_62 = arith.constant 0 : index
    %c0_63 = arith.constant 0 : index
    %178 = vector.load %arg12[%c0_61, %c0_62, %c0_63] : memref<2x64x32xbf16, #tpu.memory_space<vmem>>, vector<1x64x32xbf16>
    %179 = vector.shape_cast %178 : vector<1x64x32xbf16> to vector<64x32xbf16>
    %cst_64 = arith.constant dense<0.000000e+00> : vector<16x32xf32>
    %180 = tpu.matmul %177, %179, %cst_64 {dimension_numbers = #tpu.dot_dimension_numbers<[1], [0], [0], [1], [0, 0, 1, 1], [], []>} : vector<16x64xbf16>, vector<64x32xbf16>, vector<16x32xf32> -> vector<16x32xf32>
    %c0_65 = arith.constant 0 : index
    %c0_66 = arith.constant 0 : index
    %c0_67 = arith.constant 0 : index
    %181 = vector.load %arg13[%c0_65, %c0_66, %c0_67] : memref<2x1x32xf32, #tpu.memory_space<vmem>>, vector<1x1x32xf32>
    %182 = vector.shape_cast %181 : vector<1x1x32xf32> to vector<1x32xf32>
    %183 = vector.broadcast %182 : vector<1x32xf32> to vector<16x32xf32>
    %184 = arith.addf %180, %183 : vector<16x32xf32>
    %185 = arith.addf %166, %184 : vector<16x32xf32>
    %c0_68 = arith.constant 0 : index
    %c0_69 = arith.constant 0 : index
    %c0_70 = arith.constant 0 : index
    %186 = vector.load %arg8[%c0_68, %c0_69, %c0_70] : memref<2x1x32xf32, #tpu.memory_space<vmem>>, vector<1x1x32xf32>
    %187 = vector.shape_cast %186 : vector<1x1x32xf32> to vector<1x32xf32>
    %c0_71 = arith.constant 0 : index
    %c0_72 = arith.constant 0 : index
    %c0_73 = arith.constant 0 : index
    %188 = vector.load %arg9[%c0_71, %c0_72, %c0_73] : memref<2x1x32xf32, #tpu.memory_space<vmem>>, vector<1x1x32xf32>
    %189 = vector.shape_cast %188 : vector<1x1x32xf32> to vector<1x32xf32>
    %cst_74 = arith.constant dense<0.000000e+00> : vector<16xf32>
    %190 = vector.multi_reduction <add>, %185, %cst_74 [1] : vector<16x32xf32> to vector<16xf32>
    %191 = vector.shape_cast %190 : vector<16xf32> to vector<16x1xf32>
    %cst_75 = arith.constant 3.200000e+01 : f32
    %192 = vector.broadcast %cst_75 : f32 to vector<16x1xf32>
    %193 = arith.divf %191, %192 : vector<16x1xf32>
    %194 = vector.broadcast %193 : vector<16x1xf32> to vector<16x32xf32>
    %195 = arith.subf %185, %194 : vector<16x32xf32>
    %196 = arith.mulf %195, %195 : vector<16x32xf32>
    %cst_76 = arith.constant dense<0.000000e+00> : vector<16xf32>
    %197 = vector.multi_reduction <add>, %196, %cst_76 [1] : vector<16x32xf32> to vector<16xf32>
    %198 = vector.shape_cast %197 : vector<16xf32> to vector<16x1xf32>
    %cst_77 = arith.constant 3.200000e+01 : f32
    %199 = vector.broadcast %cst_77 : f32 to vector<16x1xf32>
    %200 = arith.divf %198, %199 : vector<16x1xf32>
    %201 = vector.broadcast %193 : vector<16x1xf32> to vector<16x32xf32>
    %202 = arith.subf %185, %201 : vector<16x32xf32>
    %cst_78 = arith.constant 9.99999997E-7 : f32
    %203 = vector.broadcast %cst_78 : f32 to vector<16x1xf32>
    %204 = arith.addf %200, %203 : vector<16x1xf32>
    %205 = math.rsqrt %204 : vector<16x1xf32>
    %206 = vector.broadcast %205 : vector<16x1xf32> to vector<16x32xf32>
    %207 = arith.mulf %202, %206 : vector<16x32xf32>
    %208 = vector.broadcast %187 : vector<1x32xf32> to vector<16x32xf32>
    %209 = arith.mulf %207, %208 : vector<16x32xf32>
    %210 = vector.broadcast %189 : vector<1x32xf32> to vector<16x32xf32>
    %211 = arith.addf %209, %210 : vector<16x32xf32>
    %212 = arith.truncf %211 : vector<16x32xf32> to vector<16x32xbf16>
    %c1 = arith.constant 1 : index
    %c0_79 = arith.constant 0 : index
    %c0_80 = arith.constant 0 : index
    %213 = vector.load %arg2[%c1, %c0_79, %c0_80] : memref<2x32x96xbf16, #tpu.memory_space<vmem>>, vector<1x32x96xbf16>
    %214 = vector.shape_cast %213 : vector<1x32x96xbf16> to vector<32x96xbf16>
    %cst_81 = arith.constant dense<0.000000e+00> : vector<16x96xf32>
    %215 = tpu.matmul %212, %214, %cst_81 {dimension_numbers = #tpu.dot_dimension_numbers<[1], [0], [0], [1], [0, 0, 1, 1], [], []>} : vector<16x32xbf16>, vector<32x96xbf16>, vector<16x96xf32> -> vector<16x96xf32>
    %c1_82 = arith.constant 1 : index
    %c0_83 = arith.constant 0 : index
    %c0_84 = arith.constant 0 : index
    %216 = vector.load %arg3[%c1_82, %c0_83, %c0_84] : memref<2x1x96xf32, #tpu.memory_space<vmem>>, vector<1x1x96xf32>
    %217 = vector.shape_cast %216 : vector<1x1x96xf32> to vector<1x96xf32>
    %218 = vector.broadcast %217 : vector<1x96xf32> to vector<16x96xf32>
    %219 = arith.addf %215, %218 : vector<16x96xf32>
    %c1_85 = arith.constant 1 : index
    %c0_86 = arith.constant 0 : index
    %c0_87 = arith.constant 0 : index
    %c0_88 = arith.constant 0 : index
    %220 = vector.load %arg4[%c1_85, %c0_86, %c0_87, %c0_88] : memref<2x4x8x32xbf16, #tpu.memory_space<vmem>>, vector<1x4x8x32xbf16>
    %221 = vector.shape_cast %220 : vector<1x4x8x32xbf16> to vector<4x8x32xbf16>
    %cst_89 = arith.constant 0.000000e+00 : f32
    %222 = vector.broadcast %cst_89 : f32 to vector<16x32xf32>
    %223 = vector.extract_strided_slice %219 {offsets = [0, 0], sizes = [16, 8], strides = [1, 1]} : vector<16x96xf32> to vector<16x8xf32>
    %224 = vector.shape_cast %223 : vector<16x8xf32> to vector<2x8x8xf32>
    %225 = arith.truncf %224 : vector<2x8x8xf32> to vector<2x8x8xbf16>
    %226 = vector.extract_strided_slice %219 {offsets = [0, 32], sizes = [16, 8], strides = [1, 1]} : vector<16x96xf32> to vector<16x8xf32>
    %227 = vector.shape_cast %226 : vector<16x8xf32> to vector<2x8x8xf32>
    %228 = arith.truncf %227 : vector<2x8x8xf32> to vector<2x8x8xbf16>
    %229 = vector.extract_strided_slice %219 {offsets = [0, 64], sizes = [16, 8], strides = [1, 1]} : vector<16x96xf32> to vector<16x8xf32>
    %230 = vector.shape_cast %229 : vector<16x8xf32> to vector<2x8x8xf32>
    %231 = arith.truncf %230 : vector<2x8x8xf32> to vector<2x8x8xbf16>
    "tpu.trace_start"() <{level = 10 : i32, message = "bqd,bkd->bqk"}> : () -> ()
    %cst_90 = arith.constant dense<0.000000e+00> : vector<2x8x8xf32>
    %232 = tpu.matmul %225, %228, %cst_90 {dimension_numbers = #tpu.dot_dimension_numbers<[2], [2], [1], [1], [0, 0, 0, 1, 1, 1], [0], [0]>} : vector<2x8x8xbf16>, vector<2x8x8xbf16>, vector<2x8x8xf32> -> vector<2x8x8xf32>
    "tpu.trace_stop"() : () -> ()
    %cst_91 = arith.constant 0.353553385 : f32
    %233 = vector.broadcast %cst_91 : f32 to vector<2x8x8xf32>
    %234 = arith.mulf %232, %233 : vector<2x8x8xf32>
    %cst_92 = arith.constant dense<0xFF800000> : vector<2x8xf32>
    %235 = vector.multi_reduction <maximumf>, %234, %cst_92 [2] : vector<2x8x8xf32> to vector<2x8xf32>
    %236 = vector.shape_cast %235 : vector<2x8xf32> to vector<2x8x1xf32>
    %237 = vector.broadcast %236 : vector<2x8x1xf32> to vector<2x8x8xf32>
    %238 = arith.subf %234, %237 : vector<2x8x8xf32>
    %239 = math.exp %238 : vector<2x8x8xf32>
    %cst_93 = arith.constant dense<0.000000e+00> : vector<2x8xf32>
    %240 = vector.multi_reduction <add>, %239, %cst_93 [2] : vector<2x8x8xf32> to vector<2x8xf32>
    %241 = vector.shape_cast %240 : vector<2x8xf32> to vector<2x8x1xf32>
    %242 = tpu.reciprocal %241 {approx = true} : vector<2x8x1xf32> -> vector<2x8x1xf32>
    %243 = vector.broadcast %242 : vector<2x8x1xf32> to vector<2x8x8xf32>
    %244 = arith.mulf %239, %243 : vector<2x8x8xf32>
    %245 = arith.truncf %244 : vector<2x8x8xf32> to vector<2x8x8xbf16>
    "tpu.trace_start"() <{level = 10 : i32, message = "bqk,bkd->bqd"}> : () -> ()
    %cst_94 = arith.constant dense<0.000000e+00> : vector<2x8x8xf32>
    %246 = tpu.matmul %245, %231, %cst_94 {dimension_numbers = #tpu.dot_dimension_numbers<[2], [1], [1], [2], [0, 0, 0, 1, 1, 2], [0], [0]>} : vector<2x8x8xbf16>, vector<2x8x8xbf16>, vector<2x8x8xf32> -> vector<2x8x8xf32>
    "tpu.trace_stop"() : () -> ()
    %247 = vector.shape_cast %246 : vector<2x8x8xf32> to vector<16x8xf32>
    %248 = arith.truncf %247 : vector<16x8xf32> to vector<16x8xbf16>
    %249 = vector.extract_strided_slice %221 {offsets = [0, 0, 0], sizes = [1, 8, 32], strides = [1, 1, 1]} : vector<4x8x32xbf16> to vector<1x8x32xbf16>
    %250 = vector.shape_cast %249 : vector<1x8x32xbf16> to vector<8x32xbf16>
    %cst_95 = arith.constant dense<0.000000e+00> : vector<16x32xf32>
    %251 = tpu.matmul %248, %250, %cst_95 {dimension_numbers = #tpu.dot_dimension_numbers<[1], [0], [0], [1], [0, 0, 1, 1], [], []>} : vector<16x8xbf16>, vector<8x32xbf16>, vector<16x32xf32> -> vector<16x32xf32>
    %252 = arith.addf %222, %251 : vector<16x32xf32>
    %253 = vector.extract_strided_slice %219 {offsets = [0, 8], sizes = [16, 8], strides = [1, 1]} : vector<16x96xf32> to vector<16x8xf32>
    %254 = vector.shape_cast %253 : vector<16x8xf32> to vector<2x8x8xf32>
    %255 = arith.truncf %254 : vector<2x8x8xf32> to vector<2x8x8xbf16>
    %256 = vector.extract_strided_slice %219 {offsets = [0, 40], sizes = [16, 8], strides = [1, 1]} : vector<16x96xf32> to vector<16x8xf32>
    %257 = vector.shape_cast %256 : vector<16x8xf32> to vector<2x8x8xf32>
    %258 = arith.truncf %257 : vector<2x8x8xf32> to vector<2x8x8xbf16>
    %259 = vector.extract_strided_slice %219 {offsets = [0, 72], sizes = [16, 8], strides = [1, 1]} : vector<16x96xf32> to vector<16x8xf32>
    %260 = vector.shape_cast %259 : vector<16x8xf32> to vector<2x8x8xf32>
    %261 = arith.truncf %260 : vector<2x8x8xf32> to vector<2x8x8xbf16>
    "tpu.trace_start"() <{level = 10 : i32, message = "bqd,bkd->bqk"}> : () -> ()
    %cst_96 = arith.constant dense<0.000000e+00> : vector<2x8x8xf32>
    %262 = tpu.matmul %255, %258, %cst_96 {dimension_numbers = #tpu.dot_dimension_numbers<[2], [2], [1], [1], [0, 0, 0, 1, 1, 1], [0], [0]>} : vector<2x8x8xbf16>, vector<2x8x8xbf16>, vector<2x8x8xf32> -> vector<2x8x8xf32>
    "tpu.trace_stop"() : () -> ()
    %cst_97 = arith.constant 0.353553385 : f32
    %263 = vector.broadcast %cst_97 : f32 to vector<2x8x8xf32>
    %264 = arith.mulf %262, %263 : vector<2x8x8xf32>
    %cst_98 = arith.constant dense<0xFF800000> : vector<2x8xf32>
    %265 = vector.multi_reduction <maximumf>, %264, %cst_98 [2] : vector<2x8x8xf32> to vector<2x8xf32>
    %266 = vector.shape_cast %265 : vector<2x8xf32> to vector<2x8x1xf32>
    %267 = vector.broadcast %266 : vector<2x8x1xf32> to vector<2x8x8xf32>
    %268 = arith.subf %264, %267 : vector<2x8x8xf32>
    %269 = math.exp %268 : vector<2x8x8xf32>
    %cst_99 = arith.constant dense<0.000000e+00> : vector<2x8xf32>
    %270 = vector.multi_reduction <add>, %269, %cst_99 [2] : vector<2x8x8xf32> to vector<2x8xf32>
    %271 = vector.shape_cast %270 : vector<2x8xf32> to vector<2x8x1xf32>
    %272 = tpu.reciprocal %271 {approx = true} : vector<2x8x1xf32> -> vector<2x8x1xf32>
    %273 = vector.broadcast %272 : vector<2x8x1xf32> to vector<2x8x8xf32>
    %274 = arith.mulf %269, %273 : vector<2x8x8xf32>
    %275 = arith.truncf %274 : vector<2x8x8xf32> to vector<2x8x8xbf16>
    "tpu.trace_start"() <{level = 10 : i32, message = "bqk,bkd->bqd"}> : () -> ()
    %cst_100 = arith.constant dense<0.000000e+00> : vector<2x8x8xf32>
    %276 = tpu.matmul %275, %261, %cst_100 {dimension_numbers = #tpu.dot_dimension_numbers<[2], [1], [1], [2], [0, 0, 0, 1, 1, 2], [0], [0]>} : vector<2x8x8xbf16>, vector<2x8x8xbf16>, vector<2x8x8xf32> -> vector<2x8x8xf32>
    "tpu.trace_stop"() : () -> ()
    %277 = vector.shape_cast %276 : vector<2x8x8xf32> to vector<16x8xf32>
    %278 = arith.truncf %277 : vector<16x8xf32> to vector<16x8xbf16>
    %279 = vector.extract_strided_slice %221 {offsets = [1, 0, 0], sizes = [1, 8, 32], strides = [1, 1, 1]} : vector<4x8x32xbf16> to vector<1x8x32xbf16>
    %280 = vector.shape_cast %279 : vector<1x8x32xbf16> to vector<8x32xbf16>
    %cst_101 = arith.constant dense<0.000000e+00> : vector<16x32xf32>
    %281 = tpu.matmul %278, %280, %cst_101 {dimension_numbers = #tpu.dot_dimension_numbers<[1], [0], [0], [1], [0, 0, 1, 1], [], []>} : vector<16x8xbf16>, vector<8x32xbf16>, vector<16x32xf32> -> vector<16x32xf32>
    %282 = arith.addf %252, %281 : vector<16x32xf32>
    %283 = vector.extract_strided_slice %219 {offsets = [0, 16], sizes = [16, 8], strides = [1, 1]} : vector<16x96xf32> to vector<16x8xf32>
    %284 = vector.shape_cast %283 : vector<16x8xf32> to vector<2x8x8xf32>
    %285 = arith.truncf %284 : vector<2x8x8xf32> to vector<2x8x8xbf16>
    %286 = vector.extract_strided_slice %219 {offsets = [0, 48], sizes = [16, 8], strides = [1, 1]} : vector<16x96xf32> to vector<16x8xf32>
    %287 = vector.shape_cast %286 : vector<16x8xf32> to vector<2x8x8xf32>
    %288 = arith.truncf %287 : vector<2x8x8xf32> to vector<2x8x8xbf16>
    %289 = vector.extract_strided_slice %219 {offsets = [0, 80], sizes = [16, 8], strides = [1, 1]} : vector<16x96xf32> to vector<16x8xf32>
    %290 = vector.shape_cast %289 : vector<16x8xf32> to vector<2x8x8xf32>
    %291 = arith.truncf %290 : vector<2x8x8xf32> to vector<2x8x8xbf16>
    "tpu.trace_start"() <{level = 10 : i32, message = "bqd,bkd->bqk"}> : () -> ()
    %cst_102 = arith.constant dense<0.000000e+00> : vector<2x8x8xf32>
    %292 = tpu.matmul %285, %288, %cst_102 {dimension_numbers = #tpu.dot_dimension_numbers<[2], [2], [1], [1], [0, 0, 0, 1, 1, 1], [0], [0]>} : vector<2x8x8xbf16>, vector<2x8x8xbf16>, vector<2x8x8xf32> -> vector<2x8x8xf32>
    "tpu.trace_stop"() : () -> ()
    %cst_103 = arith.constant 0.353553385 : f32
    %293 = vector.broadcast %cst_103 : f32 to vector<2x8x8xf32>
    %294 = arith.mulf %292, %293 : vector<2x8x8xf32>
    %cst_104 = arith.constant dense<0xFF800000> : vector<2x8xf32>
    %295 = vector.multi_reduction <maximumf>, %294, %cst_104 [2] : vector<2x8x8xf32> to vector<2x8xf32>
    %296 = vector.shape_cast %295 : vector<2x8xf32> to vector<2x8x1xf32>
    %297 = vector.broadcast %296 : vector<2x8x1xf32> to vector<2x8x8xf32>
    %298 = arith.subf %294, %297 : vector<2x8x8xf32>
    %299 = math.exp %298 : vector<2x8x8xf32>
    %cst_105 = arith.constant dense<0.000000e+00> : vector<2x8xf32>
    %300 = vector.multi_reduction <add>, %299, %cst_105 [2] : vector<2x8x8xf32> to vector<2x8xf32>
    %301 = vector.shape_cast %300 : vector<2x8xf32> to vector<2x8x1xf32>
    %302 = tpu.reciprocal %301 {approx = true} : vector<2x8x1xf32> -> vector<2x8x1xf32>
    %303 = vector.broadcast %302 : vector<2x8x1xf32> to vector<2x8x8xf32>
    %304 = arith.mulf %299, %303 : vector<2x8x8xf32>
    %305 = arith.truncf %304 : vector<2x8x8xf32> to vector<2x8x8xbf16>
    "tpu.trace_start"() <{level = 10 : i32, message = "bqk,bkd->bqd"}> : () -> ()
    %cst_106 = arith.constant dense<0.000000e+00> : vector<2x8x8xf32>
    %306 = tpu.matmul %305, %291, %cst_106 {dimension_numbers = #tpu.dot_dimension_numbers<[2], [1], [1], [2], [0, 0, 0, 1, 1, 2], [0], [0]>} : vector<2x8x8xbf16>, vector<2x8x8xbf16>, vector<2x8x8xf32> -> vector<2x8x8xf32>
    "tpu.trace_stop"() : () -> ()
    %307 = vector.shape_cast %306 : vector<2x8x8xf32> to vector<16x8xf32>
    %308 = arith.truncf %307 : vector<16x8xf32> to vector<16x8xbf16>
    %309 = vector.extract_strided_slice %221 {offsets = [2, 0, 0], sizes = [1, 8, 32], strides = [1, 1, 1]} : vector<4x8x32xbf16> to vector<1x8x32xbf16>
    %310 = vector.shape_cast %309 : vector<1x8x32xbf16> to vector<8x32xbf16>
    %cst_107 = arith.constant dense<0.000000e+00> : vector<16x32xf32>
    %311 = tpu.matmul %308, %310, %cst_107 {dimension_numbers = #tpu.dot_dimension_numbers<[1], [0], [0], [1], [0, 0, 1, 1], [], []>} : vector<16x8xbf16>, vector<8x32xbf16>, vector<16x32xf32> -> vector<16x32xf32>
    %312 = arith.addf %282, %311 : vector<16x32xf32>
    %313 = vector.extract_strided_slice %219 {offsets = [0, 24], sizes = [16, 8], strides = [1, 1]} : vector<16x96xf32> to vector<16x8xf32>
    %314 = vector.shape_cast %313 : vector<16x8xf32> to vector<2x8x8xf32>
    %315 = arith.truncf %314 : vector<2x8x8xf32> to vector<2x8x8xbf16>
    %316 = vector.extract_strided_slice %219 {offsets = [0, 56], sizes = [16, 8], strides = [1, 1]} : vector<16x96xf32> to vector<16x8xf32>
    %317 = vector.shape_cast %316 : vector<16x8xf32> to vector<2x8x8xf32>
    %318 = arith.truncf %317 : vector<2x8x8xf32> to vector<2x8x8xbf16>
    %319 = vector.extract_strided_slice %219 {offsets = [0, 88], sizes = [16, 8], strides = [1, 1]} : vector<16x96xf32> to vector<16x8xf32>
    %320 = vector.shape_cast %319 : vector<16x8xf32> to vector<2x8x8xf32>
    %321 = arith.truncf %320 : vector<2x8x8xf32> to vector<2x8x8xbf16>
    "tpu.trace_start"() <{level = 10 : i32, message = "bqd,bkd->bqk"}> : () -> ()
    %cst_108 = arith.constant dense<0.000000e+00> : vector<2x8x8xf32>
    %322 = tpu.matmul %315, %318, %cst_108 {dimension_numbers = #tpu.dot_dimension_numbers<[2], [2], [1], [1], [0, 0, 0, 1, 1, 1], [0], [0]>} : vector<2x8x8xbf16>, vector<2x8x8xbf16>, vector<2x8x8xf32> -> vector<2x8x8xf32>
    "tpu.trace_stop"() : () -> ()
    %cst_109 = arith.constant 0.353553385 : f32
    %323 = vector.broadcast %cst_109 : f32 to vector<2x8x8xf32>
    %324 = arith.mulf %322, %323 : vector<2x8x8xf32>
    %cst_110 = arith.constant dense<0xFF800000> : vector<2x8xf32>
    %325 = vector.multi_reduction <maximumf>, %324, %cst_110 [2] : vector<2x8x8xf32> to vector<2x8xf32>
    %326 = vector.shape_cast %325 : vector<2x8xf32> to vector<2x8x1xf32>
    %327 = vector.broadcast %326 : vector<2x8x1xf32> to vector<2x8x8xf32>
    %328 = arith.subf %324, %327 : vector<2x8x8xf32>
    %329 = math.exp %328 : vector<2x8x8xf32>
    %cst_111 = arith.constant dense<0.000000e+00> : vector<2x8xf32>
    %330 = vector.multi_reduction <add>, %329, %cst_111 [2] : vector<2x8x8xf32> to vector<2x8xf32>
    %331 = vector.shape_cast %330 : vector<2x8xf32> to vector<2x8x1xf32>
    %332 = tpu.reciprocal %331 {approx = true} : vector<2x8x1xf32> -> vector<2x8x1xf32>
    %333 = vector.broadcast %332 : vector<2x8x1xf32> to vector<2x8x8xf32>
    %334 = arith.mulf %329, %333 : vector<2x8x8xf32>
    %335 = arith.truncf %334 : vector<2x8x8xf32> to vector<2x8x8xbf16>
    "tpu.trace_start"() <{level = 10 : i32, message = "bqk,bkd->bqd"}> : () -> ()
    %cst_112 = arith.constant dense<0.000000e+00> : vector<2x8x8xf32>
    %336 = tpu.matmul %335, %321, %cst_112 {dimension_numbers = #tpu.dot_dimension_numbers<[2], [1], [1], [2], [0, 0, 0, 1, 1, 2], [0], [0]>} : vector<2x8x8xbf16>, vector<2x8x8xbf16>, vector<2x8x8xf32> -> vector<2x8x8xf32>
    "tpu.trace_stop"() : () -> ()
    %337 = vector.shape_cast %336 : vector<2x8x8xf32> to vector<16x8xf32>
    %338 = arith.truncf %337 : vector<16x8xf32> to vector<16x8xbf16>
    %339 = vector.extract_strided_slice %221 {offsets = [3, 0, 0], sizes = [1, 8, 32], strides = [1, 1, 1]} : vector<4x8x32xbf16> to vector<1x8x32xbf16>
    %340 = vector.shape_cast %339 : vector<1x8x32xbf16> to vector<8x32xbf16>
    %cst_113 = arith.constant dense<0.000000e+00> : vector<16x32xf32>
    %341 = tpu.matmul %338, %340, %cst_113 {dimension_numbers = #tpu.dot_dimension_numbers<[1], [0], [0], [1], [0, 0, 1, 1], [], []>} : vector<16x8xbf16>, vector<8x32xbf16>, vector<16x32xf32> -> vector<16x32xf32>
    %342 = arith.addf %312, %341 : vector<16x32xf32>
    %c1_114 = arith.constant 1 : index
    %c0_115 = arith.constant 0 : index
    %c0_116 = arith.constant 0 : index
    %343 = vector.load %arg5[%c1_114, %c0_115, %c0_116] : memref<2x1x32xf32, #tpu.memory_space<vmem>>, vector<1x1x32xf32>
    %344 = vector.shape_cast %343 : vector<1x1x32xf32> to vector<1x32xf32>
    %345 = vector.broadcast %344 : vector<1x32xf32> to vector<16x32xf32>
    %346 = arith.addf %342, %345 : vector<16x32xf32>
    %347 = arith.addf %211, %346 : vector<16x32xf32>
    %c1_117 = arith.constant 1 : index
    %c0_118 = arith.constant 0 : index
    %c0_119 = arith.constant 0 : index
    %348 = vector.load %arg6[%c1_117, %c0_118, %c0_119] : memref<2x1x32xf32, #tpu.memory_space<vmem>>, vector<1x1x32xf32>
    %349 = vector.shape_cast %348 : vector<1x1x32xf32> to vector<1x32xf32>
    %c1_120 = arith.constant 1 : index
    %c0_121 = arith.constant 0 : index
    %c0_122 = arith.constant 0 : index
    %350 = vector.load %arg7[%c1_120, %c0_121, %c0_122] : memref<2x1x32xf32, #tpu.memory_space<vmem>>, vector<1x1x32xf32>
    %351 = vector.shape_cast %350 : vector<1x1x32xf32> to vector<1x32xf32>
    %cst_123 = arith.constant dense<0.000000e+00> : vector<16xf32>
    %352 = vector.multi_reduction <add>, %347, %cst_123 [1] : vector<16x32xf32> to vector<16xf32>
    %353 = vector.shape_cast %352 : vector<16xf32> to vector<16x1xf32>
    %cst_124 = arith.constant 3.200000e+01 : f32
    %354 = vector.broadcast %cst_124 : f32 to vector<16x1xf32>
    %355 = arith.divf %353, %354 : vector<16x1xf32>
    %356 = vector.broadcast %355 : vector<16x1xf32> to vector<16x32xf32>
    %357 = arith.subf %347, %356 : vector<16x32xf32>
    %358 = arith.mulf %357, %357 : vector<16x32xf32>
    %cst_125 = arith.constant dense<0.000000e+00> : vector<16xf32>
    %359 = vector.multi_reduction <add>, %358, %cst_125 [1] : vector<16x32xf32> to vector<16xf32>
    %360 = vector.shape_cast %359 : vector<16xf32> to vector<16x1xf32>
    %cst_126 = arith.constant 3.200000e+01 : f32
    %361 = vector.broadcast %cst_126 : f32 to vector<16x1xf32>
    %362 = arith.divf %360, %361 : vector<16x1xf32>
    %363 = vector.broadcast %355 : vector<16x1xf32> to vector<16x32xf32>
    %364 = arith.subf %347, %363 : vector<16x32xf32>
    %cst_127 = arith.constant 9.99999997E-7 : f32
    %365 = vector.broadcast %cst_127 : f32 to vector<16x1xf32>
    %366 = arith.addf %362, %365 : vector<16x1xf32>
    %367 = math.rsqrt %366 : vector<16x1xf32>
    %368 = vector.broadcast %367 : vector<16x1xf32> to vector<16x32xf32>
    %369 = arith.mulf %364, %368 : vector<16x32xf32>
    %370 = vector.broadcast %349 : vector<1x32xf32> to vector<16x32xf32>
    %371 = arith.mulf %369, %370 : vector<16x32xf32>
    %372 = vector.broadcast %351 : vector<1x32xf32> to vector<16x32xf32>
    %373 = arith.addf %371, %372 : vector<16x32xf32>
    %374 = arith.truncf %373 : vector<16x32xf32> to vector<16x32xbf16>
    %c1_128 = arith.constant 1 : index
    %c0_129 = arith.constant 0 : index
    %c0_130 = arith.constant 0 : index
    %375 = vector.load %arg10[%c1_128, %c0_129, %c0_130] : memref<2x32x64xbf16, #tpu.memory_space<vmem>>, vector<1x32x64xbf16>
    %376 = vector.shape_cast %375 : vector<1x32x64xbf16> to vector<32x64xbf16>
    %cst_131 = arith.constant dense<0.000000e+00> : vector<16x64xf32>
    %377 = tpu.matmul %374, %376, %cst_131 {dimension_numbers = #tpu.dot_dimension_numbers<[1], [0], [0], [1], [0, 0, 1, 1], [], []>} : vector<16x32xbf16>, vector<32x64xbf16>, vector<16x64xf32> -> vector<16x64xf32>
    %c1_132 = arith.constant 1 : index
    %c0_133 = arith.constant 0 : index
    %c0_134 = arith.constant 0 : index
    %378 = vector.load %arg11[%c1_132, %c0_133, %c0_134] : memref<2x1x64xf32, #tpu.memory_space<vmem>>, vector<1x1x64xf32>
    %379 = vector.shape_cast %378 : vector<1x1x64xf32> to vector<1x64xf32>
    %380 = vector.broadcast %379 : vector<1x64xf32> to vector<16x64xf32>
    %381 = arith.addf %377, %380 : vector<16x64xf32>
    %cst_135 = arith.constant 0.000000e+00 : f32
    %382 = vector.broadcast %cst_135 : f32 to vector<16x64xf32>
    %383 = arith.maximumf %381, %382 : vector<16x64xf32>
    %384 = arith.truncf %383 : vector<16x64xf32> to vector<16x64xbf16>
    %c1_136 = arith.constant 1 : index
    %c0_137 = arith.constant 0 : index
    %c0_138 = arith.constant 0 : index
    %385 = vector.load %arg12[%c1_136, %c0_137, %c0_138] : memref<2x64x32xbf16, #tpu.memory_space<vmem>>, vector<1x64x32xbf16>
    %386 = vector.shape_cast %385 : vector<1x64x32xbf16> to vector<64x32xbf16>
    %cst_139 = arith.constant dense<0.000000e+00> : vector<16x32xf32>
    %387 = tpu.matmul %384, %386, %cst_139 {dimension_numbers = #tpu.dot_dimension_numbers<[1], [0], [0], [1], [0, 0, 1, 1], [], []>} : vector<16x64xbf16>, vector<64x32xbf16>, vector<16x32xf32> -> vector<16x32xf32>
    %c1_140 = arith.constant 1 : index
    %c0_141 = arith.constant 0 : index
    %c0_142 = arith.constant 0 : index
    %388 = vector.load %arg13[%c1_140, %c0_141, %c0_142] : memref<2x1x32xf32, #tpu.memory_space<vmem>>, vector<1x1x32xf32>
    %389 = vector.shape_cast %388 : vector<1x1x32xf32> to vector<1x32xf32>
    %390 = vector.broadcast %389 : vector<1x32xf32> to vector<16x32xf32>
    %391 = arith.addf %387, %390 : vector<16x32xf32>
    %392 = arith.addf %373, %391 : vector<16x32xf32>
    %c1_143 = arith.constant 1 : index
    %c0_144 = arith.constant 0 : index
    %c0_145 = arith.constant 0 : index
    %393 = vector.load %arg8[%c1_143, %c0_144, %c0_145] : memref<2x1x32xf32, #tpu.memory_space<vmem>>, vector<1x1x32xf32>
    %394 = vector.shape_cast %393 : vector<1x1x32xf32> to vector<1x32xf32>
    %c1_146 = arith.constant 1 : index
    %c0_147 = arith.constant 0 : index
    %c0_148 = arith.constant 0 : index
    %395 = vector.load %arg9[%c1_146, %c0_147, %c0_148] : memref<2x1x32xf32, #tpu.memory_space<vmem>>, vector<1x1x32xf32>
    %396 = vector.shape_cast %395 : vector<1x1x32xf32> to vector<1x32xf32>
    %cst_149 = arith.constant dense<0.000000e+00> : vector<16xf32>
    %397 = vector.multi_reduction <add>, %392, %cst_149 [1] : vector<16x32xf32> to vector<16xf32>
    %398 = vector.shape_cast %397 : vector<16xf32> to vector<16x1xf32>
    %cst_150 = arith.constant 3.200000e+01 : f32
    %399 = vector.broadcast %cst_150 : f32 to vector<16x1xf32>
    %400 = arith.divf %398, %399 : vector<16x1xf32>
    %401 = vector.broadcast %400 : vector<16x1xf32> to vector<16x32xf32>
    %402 = arith.subf %392, %401 : vector<16x32xf32>
    %403 = arith.mulf %402, %402 : vector<16x32xf32>
    %cst_151 = arith.constant dense<0.000000e+00> : vector<16xf32>
    %404 = vector.multi_reduction <add>, %403, %cst_151 [1] : vector<16x32xf32> to vector<16xf32>
    %405 = vector.shape_cast %404 : vector<16xf32> to vector<16x1xf32>
    %cst_152 = arith.constant 3.200000e+01 : f32
    %406 = vector.broadcast %cst_152 : f32 to vector<16x1xf32>
    %407 = arith.divf %405, %406 : vector<16x1xf32>
    %408 = vector.broadcast %400 : vector<16x1xf32> to vector<16x32xf32>
    %409 = arith.subf %392, %408 : vector<16x32xf32>
    %cst_153 = arith.constant 9.99999997E-7 : f32
    %410 = vector.broadcast %cst_153 : f32 to vector<16x1xf32>
    %411 = arith.addf %407, %410 : vector<16x1xf32>
    %412 = math.rsqrt %411 : vector<16x1xf32>
    %413 = vector.broadcast %412 : vector<16x1xf32> to vector<16x32xf32>
    %414 = arith.mulf %409, %413 : vector<16x32xf32>
    %415 = vector.broadcast %394 : vector<1x32xf32> to vector<16x32xf32>
    %416 = arith.mulf %414, %415 : vector<16x32xf32>
    %417 = vector.broadcast %396 : vector<1x32xf32> to vector<16x32xf32>
    %418 = arith.addf %416, %417 : vector<16x32xf32>
    %c0_154 = arith.constant 0 : index
    %c0_155 = arith.constant 0 : index
    %419 = vector.load %arg14[%c0_154, %c0_155] : memref<16x32xf32, #tpu.memory_space<vmem>>, vector<16x32xf32>
    tpu.vector_store %arg14[%c0_154, %c0_155], %418 {strides = array<i32>} : memref<16x32xf32, #tpu.memory_space<vmem>>, vector<16x32xf32>,
    return
  }
}

</mosaic_0001>

<llo_original>
// kernel: encoder_forward.1
$region0: #{encoder_forward.1}
  #allocation0 [shape = 'u32[]', space=smem, size = 0x4, offset = 0x4, fixed_abs, tag = 'smem constant byte address 0x4 - core index']
  #allocation1 [shape = 'u32[72,128]{1,0:T(1,128)}', space=vmem, size = 0x9000, scoped, tag = 'internal scratch']
  %s0 = inlined_call_operand.vmem [shape: f32[16,32], index: 0, kind: input, shape index: {}]
  %s1 = inlined_call_operand.vmem [shape: f32[16,32], index: 1, kind: input, shape index: {}]
  %s2 = inlined_call_operand.vmem [shape: bf16[2,32,96], index: 2, kind: input, shape index: {}]
  %s3 = inlined_call_operand.vmem [shape: f32[2,1,96], index: 3, kind: input, shape index: {}]
  %s4 = inlined_call_operand.vmem [shape: bf16[2,4,8,32], index: 4, kind: input, shape index: {}]
  %s5 = inlined_call_operand.vmem [shape: f32[2,1,32], index: 5, kind: input, shape index: {}]
  %s6 = inlined_call_operand.vmem [shape: f32[2,1,32], index: 6, kind: input, shape index: {}]
  %s7 = inlined_call_operand.vmem [shape: f32[2,1,32], index: 7, kind: input, shape index: {}]
  %s8 = inlined_call_operand.vmem [shape: f32[2,1,32], index: 8, kind: input, shape index: {}]
  %s9 = inlined_call_operand.vmem [shape: f32[2,1,32], index: 9, kind: input, shape index: {}]
  %s10 = inlined_call_operand.vmem [shape: bf16[2,32,64], index: 10, kind: input, shape index: {}]
  %s11 = inlined_call_operand.vmem [shape: f32[2,1,64], index: 11, kind: input, shape index: {}]
  %s12 = inlined_call_operand.vmem [shape: bf16[2,64,32], index: 12, kind: input, shape index: {}]
  %s13 = inlined_call_operand.vmem [shape: f32[2,1,32], index: 13, kind: input, shape index: {}]
  %s14 = inlined_call_operand.hbm [shape: f32[16,32], index: 14, kind: output, shape index: {}]
  %s15 = sld [smem:[#allocation0]]
  $region66: #{encoder_forward.1} parent=0
    _
  %s17 = ssub.s32 1, %s15
  %s18 = scalar_select 0, %s17, %s15
  $region1: #{encoder_forward.1} parent=0
    #allocation2 [shape = 'u8[8192]{0}', space=vmem, size = 0x2000, scoped, tag = 'output window, operand 0, single buffered']
    #allocation3 [shape = 's32[1]{0}', space=sflag, size = 0x4, scoped, tag = 'scoped memory for encoder_forward.1']
    %19 = vsyncpa [#allocation3], 0
    // Predicated region
    $region2: #{encoder_forward.1} parent=1 // pred_check
      _
    $region3: #{encoder_forward.1} parent=1 // pred_check_branch
      %21 = sbr.rel (0) target = $region5
    $region4: #{encoder_forward.1} parent=1 // pred_region
      _
    $region5: #{encoder_forward.1} parent=1 // pred_fallthru
      _
    // Predicated region
    $region6: #{encoder_forward.1} parent=1 // pred_check
      _
    $region7: #{encoder_forward.1} parent=1 // pred_check_branch
      %23 = sbr.rel (0) target = $region9
    $region8: #{encoder_forward.1} parent=1 // pred_region
      _
    $region9: #{encoder_forward.1} parent=1 // pred_fallthru
      _
    // Predicated region
    $region10: #{encoder_forward.1} parent=1 // pred_check
      _
    $region11: #{encoder_forward.1} parent=1 // pred_check_branch
      %25 = sbr.rel (0) target = $region13
    $region12: #{encoder_forward.1} parent=1 // pred_region
      _
    $region13: #{encoder_forward.1} parent=1 // pred_fallthru
      _
    // Predicated region
    $region14: #{encoder_forward.1} parent=1 // pred_check
      _
    $region15: #{encoder_forward.1} parent=1 // pred_check_branch
      %27 = sbr.rel (0) target = $region17
    $region16: #{encoder_forward.1} parent=1 // pred_region
      _
    $region17: #{encoder_forward.1} parent=1 // pred_fallthru
      _
    // Predicated region
    $region18: #{encoder_forward.1} parent=1 // pred_check
      _
    $region19: #{encoder_forward.1} parent=1 // pred_check_branch
      %29 = sbr.rel (0) target = $region21
    $region20: #{encoder_forward.1} parent=1 // pred_region
      _
    $region21: #{encoder_forward.1} parent=1 // pred_fallthru
      _
    // Predicated region
    $region22: #{encoder_forward.1} parent=1 // pred_check
      _
    $region23: #{encoder_forward.1} parent=1 // pred_check_branch
      %31 = sbr.rel (0) target = $region25
    $region24: #{encoder_forward.1} parent=1 // pred_region
      _
    $region25: #{encoder_forward.1} parent=1 // pred_fallthru
      _
    // Predicated region
    $region26: #{encoder_forward.1} parent=1 // pred_check
      _
    $region27: #{encoder_forward.1} parent=1 // pred_check_branch
      %33 = sbr.rel (0) target = $region29
    $region28: #{encoder_forward.1} parent=1 // pred_region
      _
    $region29: #{encoder_forward.1} parent=1 // pred_fallthru
      _
    // Predicated region
    $region30: #{encoder_forward.1} parent=1 // pred_check
      _
    $region31: #{encoder_forward.1} parent=1 // pred_check_branch
      %35 = sbr.rel (0) target = $region33
    $region32: #{encoder_forward.1} parent=1 // pred_region
      _
    $region33: #{encoder_forward.1} parent=1 // pred_fallthru
      _
    // Predicated region
    $region34: #{encoder_forward.1} parent=1 // pred_check
      _
    $region35: #{encoder_forward.1} parent=1 // pred_check_branch
      %37 = sbr.rel (0) target = $region37
    $region36: #{encoder_forward.1} parent=1 // pred_region
      _
    $region37: #{encoder_forward.1} parent=1 // pred_fallthru
      _
    // Predicated region
    $region38: #{encoder_forward.1} parent=1 // pred_check
      _
    $region39: #{encoder_forward.1} parent=1 // pred_check_branch
      %39 = sbr.rel (0) target = $region41
    $region40: #{encoder_forward.1} parent=1 // pred_region
      _
    $region41: #{encoder_forward.1} parent=1 // pred_fallthru
      _
    // Predicated region
    $region42: #{encoder_forward.1} parent=1 // pred_check
      _
    $region43: #{encoder_forward.1} parent=1 // pred_check_branch
      %41 = sbr.rel (0) target = $region45
    $region44: #{encoder_forward.1} parent=1 // pred_region
      _
    $region45: #{encoder_forward.1} parent=1 // pred_fallthru
      _
    // Predicated region
    $region46: #{encoder_forward.1} parent=1 // pred_check
      _
    $region47: #{encoder_forward.1} parent=1 // pred_check_branch
      %43 = sbr.rel (0) target = $region49
    $region48: #{encoder_forward.1} parent=1 // pred_region
      _
    $region49: #{encoder_forward.1} parent=1 // pred_fallthru
      _
    // Predicated region
    $region50: #{encoder_forward.1} parent=1 // pred_check
      _
    $region51: #{encoder_forward.1} parent=1 // pred_check_branch
      %45 = sbr.rel (0) target = $region53
    $region52: #{encoder_forward.1} parent=1 // pred_region
      _
    $region53: #{encoder_forward.1} parent=1 // pred_fallthru
      _
    // Predicated region
    $region54: #{encoder_forward.1} parent=1 // pred_check
      _
    $region55: #{encoder_forward.1} parent=1 // pred_check_branch
      %47 = sbr.rel (0) target = $region57
    $region56: #{encoder_forward.1} parent=1 // pred_region
      _
    $region57: #{encoder_forward.1} parent=1 // pred_fallthru
      _
    %v49 = vld [vmem:[%s0] sm:$0xff]
    %v50 = vld [vmem:[%s0 + $0x8] sm:$0xff]
    %v51 = vmul.f32 %v49, 5.656854
    %v52 = vmul.f32 %v50, 5.656854
    %v53 = vld [vmem:[%s1] sm:$0xff]
    %v54 = vld [vmem:[%s1 + $0x8] sm:$0xff]
    %v55 = vadd.f32 %v51, %v53
    %v56 = vadd.f32 %v52, %v54
    %v57 = vpack.c.bf16 %v56, %v55
    %v58 = vld [vmem:[%s2] sm:$0xf]
    %v59 = vld [vmem:[%s2 + $0x4] sm:$0xf]
    %v60 = vld [vmem:[%s2 + $0x8] sm:$0xf]
    %v61 = vld [vmem:[%s2 + $0xc] sm:$0xf]
    %v62 = vld [vmem:[%s3] sm:$0x1]
    %v64 = vperm.slane %v62, 0
    %v70 = vunpack.c.l.b16 %v58
    %v71 = vunpack.c.l.b16 %v59
    %v72 = vunpack.c.l.b16 %v60
    %v73 = vunpack.c.l.b16 %v61
    %v74 = vpack.c.b16 %v71, %v70
    %v75 = vpack.c.b16 %v73, %v72
    %vm78 = vcmask 261120
    %v80 = vsel %vm78, %v57, 0
    %82 = vmatpush.bf16.msra.mxu0 0
    %83 = vmatpush.bf16.msra.mxu0 0
    %84 = vmatpush.bf16.msra.mxu0 0
    %85 = vmatpush.bf16.msra.mxu0 0
    %86 = vmatpush.bf16.msra.mxu0 0
    %87 = vmatpush.bf16.msra.mxu0 0
    %88 = vmatpush.bf16.msra.mxu0 %v75
    %89 = vmatpush.bf16.msra.mxu0 %v74
    %90 = vmatmul.bf16.gmra.mxu0 %v80
    %v91 = vpop.f32.mrf.mxu0
    %v92 = vadd.f32 %v64, %v91
    %v93 = vpop.f32.mrf.mxu0
    %v94 = vadd.f32 %v64, %v93
    %95 = vdwg.mxu0
    %v96 = vld [vmem:[%s4] sm:$0xf]
    %v97 = vld [vmem:[%s4 + $0x4] sm:$0xf]
    %v98 = vld [vmem:[%s4 + $0x8] sm:$0xf]
    %v99 = vld [vmem:[%s4 + $0xc] sm:$0xf]
    %v100 = vpack.c.bf16 %v92, %v92
    %v101 = vpack.c.bf16 %v94, %v94
    %v103 = vunpack.c.l.b16 %v100
    %v104 = vpack.c.b16 %v103, %v103
    %105 = vrot.lane.b32.xlu0 %v104, 96
    %v106 = vpop.permute.xlu0 %105
    %vm107 = vcmask 64512
    %v109 = vsel %vm107, %v100, 0
    %v112 = vsel %vm107, %v106, 0
    %114 = vmatpush.bf16.xpose.msra.mxu0 0
    %115 = vmatpush.bf16.xpose.msra.mxu0 0
    %116 = vmatpush.bf16.xpose.msra.mxu0 0
    %117 = vmatpush.bf16.xpose.msra.mxu0 0
    %118 = vmatpush.bf16.xpose.msra.mxu0 0
    %119 = vmatpush.bf16.xpose.msra.mxu0 0
    %120 = vmatpush.bf16.xpose.msra.mxu0 0
    %121 = vmatpush.bf16.xpose.msra.mxu0 %v112
    %122 = vmatmul.bf16.gmra.mxu0 %v109
    %v123 = vpop.f32.mrf.mxu0
    %v124 = vadd.f32 0.0, %v123
    %v125 = vpop.f32.mrf.mxu0
    %126 = vdwg.mxu0
    %v128 = vunpack.c.l.b16 %v101
    %v129 = vpack.c.b16 %v128, %v128
    %130 = vrot.lane.b32.xlu0 %v129, 96
    %v131 = vpop.permute.xlu0 %130
    %v133 = vsel %vm107, %v101, 0
    %v136 = vsel %vm107, %v131, 0
    %138 = vmatpush.bf16.xpose.msra.mxu0 0
    %139 = vmatpush.bf16.xpose.msra.mxu0 0
    %140 = vmatpush.bf16.xpose.msra.mxu0 0
    %141 = vmatpush.bf16.xpose.msra.mxu0 0
    %142 = vmatpush.bf16.xpose.msra.mxu0 0
    %143 = vmatpush.bf16.xpose.msra.mxu0 0
    %144 = vmatpush.bf16.xpose.msra.mxu0 0
    %145 = vmatpush.bf16.xpose.msra.mxu0 %v136
    %146 = vmatmul.bf16.gmra.mxu0 %v133
    %v147 = vpop.f32.mrf.mxu0
    %v148 = vadd.f32 0.0, %v147
    %v149 = vpop.f32.mrf.mxu0
    %150 = vdwg.mxu0
    %v151 = vmul.f32 %v124, 0.35355338
    %v152 = vmul.f32 %v148, 0.35355338
    %v153 = vsel %vm107, %v151, -inf
    %154 = vmax.xlane.f32.xlu0 %v153
    %v155 = vpop.xlane.xlu0 %154
    %v156 = vsel %vm107, %v152, -inf
    %157 = vmax.xlane.f32.xlu0 %v156
    %v158 = vpop.xlane.xlu0 %157
    %v159 = vsub.f32 %v151, %v155
    %v160 = vsub.f32 %v152, %v158
    %v161 = vmul.f32 %v159, 1.442695
    %v162 = vpow.pop %v161
    %v163 = vmul.f32 %v160, 1.442695
    %v164 = vpow.pop %v163
    %v165 = vsel %vm107, %v162, 0.0
    %166 = vadd.xlane.f32.xlu0 %v165
    %v167 = vpop.xlane.xlu0 %166
    %v168 = vsel %vm107, %v164, 0.0
    %169 = vadd.xlane.f32.xlu0 %v168
    %v170 = vpop.xlane.xlu0 %169
    %v171 = vrcp.pop %v167
    %v172 = vrcp.pop %v170
    %v173 = vmul.f32 %v162, %v171
    %v174 = vmul.f32 %v164, %v172
    %v175 = vpack.c.bf16 %v173, %v173
    %v176 = vpack.c.bf16 %v174, %v174
    %177 = vrot.lane.b32.xlu0 %v104, 64
    %v178 = vpop.permute.xlu0 %177
    %v180 = vsel %vm107, %v175, 0
    %vm182 = vcmask 1043456
    %v184 = vsel %vm182, %v178, 0
    %186 = vmatpush.bf16.msra.mxu0 0
    %187 = vmatpush.bf16.msra.mxu0 0
    %188 = vmatpush.bf16.msra.mxu0 0
    %189 = vmatpush.bf16.msra.mxu0 0
    %190 = vmatpush.bf16.msra.mxu0 0
    %191 = vmatpush.bf16.msra.mxu0 0
    %192 = vmatpush.bf16.msra.mxu0 0
    %193 = vmatpush.bf16.msra.mxu0 %v184
    %194 = vmatmul.bf16.gmra.mxu0 %v180
    %v195 = vpop.f32.mrf.mxu0
    %v196 = vadd.f32 0.0, %v195
    %v197 = vpop.f32.mrf.mxu0
    %198 = vdwg.mxu0
    %199 = vrot.lane.b32.xlu0 %v129, 64
    %v200 = vpop.permute.xlu0 %199
    %v202 = vsel %vm107, %v176, 0
    %v205 = vsel %vm182, %v200, 0
    %207 = vmatpush.bf16.msra.mxu0 0
    %208 = vmatpush.bf16.msra.mxu0 0
    %209 = vmatpush.bf16.msra.mxu0 0
    %210 = vmatpush.bf16.msra.mxu0 0
    %211 = vmatpush.bf16.msra.mxu0 0
    %212 = vmatpush.bf16.msra.mxu0 0
    %213 = vmatpush.bf16.msra.mxu0 0
    %214 = vmatpush.bf16.msra.mxu0 %v205
    %215 = vmatmul.bf16.gmra.mxu0 %v202
    %v216 = vpop.f32.mrf.mxu0
    %v217 = vadd.f32 0.0, %v216
    %v218 = vpop.f32.mrf.mxu0
    %219 = vdwg.mxu0
    %v220 = vpack.c.bf16 %v217, %v196
    %221 = vrot.lane.b32.xlu0 %v104, 120
    %v222 = vpop.permute.xlu0 %221
    %223 = vrot.lane.b32.xlu0 %v104, 88
    %v224 = vpop.permute.xlu0 %223
    %v226 = vsel %vm107, %v222, 0
    %v229 = vsel %vm107, %v224, 0
    %231 = vmatpush.bf16.xpose.msra.mxu0 0
    %232 = vmatpush.bf16.xpose.msra.mxu0 0
    %233 = vmatpush.bf16.xpose.msra.mxu0 0
    %234 = vmatpush.bf16.xpose.msra.mxu0 0
    %235 = vmatpush.bf16.xpose.msra.mxu0 0
    %236 = vmatpush.bf16.xpose.msra.mxu0 0
    %237 = vmatpush.bf16.xpose.msra.mxu0 0
    %238 = vmatpush.bf16.xpose.msra.mxu0 %v229
    %239 = vmatmul.bf16.gmra.mxu0 %v226
    %v240 = vpop.f32.mrf.mxu0
    %v241 = vadd.f32 0.0, %v240
    %v242 = vpop.f32.mrf.mxu0
    %243 = vdwg.mxu0
    %244 = vrot.lane.b32.xlu0 %v129, 120
    %v245 = vpop.permute.xlu0 %244
    %246 = vrot.lane.b32.xlu0 %v129, 88
    %v247 = vpop.permute.xlu0 %246
    %v249 = vsel %vm107, %v245, 0
    %v252 = vsel %vm107, %v247, 0
    %254 = vmatpush.bf16.xpose.msra.mxu0 0
    %255 = vmatpush.bf16.xpose.msra.mxu0 0
    %256 = vmatpush.bf16.xpose.msra.mxu0 0
    %257 = vmatpush.bf16.xpose.msra.mxu0 0
    %258 = vmatpush.bf16.xpose.msra.mxu0 0
    %259 = vmatpush.bf16.xpose.msra.mxu0 0
    %260 = vmatpush.bf16.xpose.msra.mxu0 0
    %261 = vmatpush.bf16.xpose.msra.mxu0 %v252
    %262 = vmatmul.bf16.gmra.mxu0 %v249
    %v263 = vpop.f32.mrf.mxu0
    %v264 = vadd.f32 0.0, %v263
    %v265 = vpop.f32.mrf.mxu0
    %266 = vdwg.mxu0
    %v267 = vmul.f32 %v241, 0.35355338
    %v268 = vmul.f32 %v264, 0.35355338
    %v269 = vsel %vm107, %v267, -inf
    %270 = vmax.xlane.f32.xlu0 %v269
    %v271 = vpop.xlane.xlu0 %270
    %v272 = vsel %vm107, %v268, -inf
    %273 = vmax.xlane.f32.xlu0 %v272
    %v274 = vpop.xlane.xlu0 %273
    %v275 = vsub.f32 %v267, %v271
    %v276 = vsub.f32 %v268, %v274
    %v277 = vmul.f32 %v275, 1.442695
    %v278 = vpow.pop %v277
    %v279 = vmul.f32 %v276, 1.442695
    %v280 = vpow.pop %v279
    %v281 = vsel %vm107, %v278, 0.0
    %282 = vadd.xlane.f32.xlu0 %v281
    %v283 = vpop.xlane.xlu0 %282
    %v284 = vsel %vm107, %v280, 0.0
    %285 = vadd.xlane.f32.xlu0 %v284
    %v286 = vpop.xlane.xlu0 %285
    %v287 = vrcp.pop %v283
    %v288 = vrcp.pop %v286
    %v289 = vmul.f32 %v278, %v287
    %v290 = vmul.f32 %v280, %v288
    %v291 = vpack.c.bf16 %v289, %v289
    %v292 = vpack.c.bf16 %v290, %v290
    %293 = vrot.lane.b32.xlu0 %v104, 56
    %v294 = vpop.permute.xlu0 %293
    %v296 = vsel %vm107, %v291, 0
    %v299 = vsel %vm182, %v294, 0
    %301 = vmatpush.bf16.msra.mxu0 0
    %302 = vmatpush.bf16.msra.mxu0 0
    %303 = vmatpush.bf16.msra.mxu0 0
    %304 = vmatpush.bf16.msra.mxu0 0
    %305 = vmatpush.bf16.msra.mxu0 0
    %306 = vmatpush.bf16.msra.mxu0 0
    %307 = vmatpush.bf16.msra.mxu0 0
    %308 = vmatpush.bf16.msra.mxu0 %v299
    %309 = vmatmul.bf16.gmra.mxu0 %v296
    %v310 = vpop.f32.mrf.mxu0
    %v311 = vadd.f32 0.0, %v310
    %v312 = vpop.f32.mrf.mxu0
    %313 = vdwg.mxu0
    %314 = vrot.lane.b32.xlu0 %v129, 56
    %v315 = vpop.permute.xlu0 %314
    %v317 = vsel %vm107, %v292, 0
    %v320 = vsel %vm182, %v315, 0
    %322 = vmatpush.bf16.msra.mxu0 0
    %323 = vmatpush.bf16.msra.mxu0 0
    %324 = vmatpush.bf16.msra.mxu0 0
    %325 = vmatpush.bf16.msra.mxu0 0
    %326 = vmatpush.bf16.msra.mxu0 0
    %327 = vmatpush.bf16.msra.mxu0 0
    %328 = vmatpush.bf16.msra.mxu0 0
    %329 = vmatpush.bf16.msra.mxu0 %v320
    %330 = vmatmul.bf16.gmra.mxu0 %v317
    %v331 = vpop.f32.mrf.mxu0
    %v332 = vadd.f32 0.0, %v331
    %v333 = vpop.f32.mrf.mxu0
    %334 = vdwg.mxu0
    %v335 = vpack.c.bf16 %v332, %v311
    %v337 = vsel %vm107, %v335, 0
    %v340 = vsel %vm182, %v97, 0
    %342 = vmatpush.bf16.msra.mxu0 0
    %343 = vmatpush.bf16.msra.mxu0 0
    %344 = vmatpush.bf16.msra.mxu0 0
    %345 = vmatpush.bf16.msra.mxu0 0
    %346 = vmatpush.bf16.msra.mxu0 0
    %347 = vmatpush.bf16.msra.mxu0 0
    %348 = vmatpush.bf16.msra.mxu0 0
    %349 = vmatpush.bf16.msra.mxu0 %v340
    %350 = vmatmul.bf16.gmra.mxu0 %v337
    %v351 = vpop.f32.mrf.mxu0
    %v352 = vadd.f32 0.0, %v351
    %v353 = vpop.f32.mrf.mxu0
    %v354 = vadd.f32 0.0, %v353
    %355 = vdwg.mxu0
    %v357 = vsel %vm107, %v220, 0
    %v360 = vsel %vm182, %v96, 0
    %362 = vmatpush.bf16.msra.mxu0 0
    %363 = vmatpush.bf16.msra.mxu0 0
    %364 = vmatpush.bf16.msra.mxu0 0
    %365 = vmatpush.bf16.msra.mxu0 0
    %366 = vmatpush.bf16.msra.mxu0 0
    %367 = vmatpush.bf16.msra.mxu0 0
    %368 = vmatpush.bf16.msra.mxu0 0
    %369 = vmatpush.bf16.msra.mxu0 %v360
    %370 = vmatmul.bf16.gmra.mxu0 %v357
    %v371 = vpop.f32.mrf.mxu0
    %v372 = vadd.f32 %v352, %v371
    %v373 = vpop.f32.mrf.mxu0
    %v374 = vadd.f32 %v354, %v373
    %375 = vdwg.mxu0
    %376 = vrot.lane.b32.xlu0 %v104, 112
    %v377 = vpop.permute.xlu0 %376
    %378 = vrot.lane.b32.xlu0 %v104, 80
    %v379 = vpop.permute.xlu0 %378
    %v381 = vsel %vm107, %v377, 0
    %v384 = vsel %vm107, %v379, 0
    %386 = vmatpush.bf16.xpose.msra.mxu0 0
    %387 = vmatpush.bf16.xpose.msra.mxu0 0
    %388 = vmatpush.bf16.xpose.msra.mxu0 0
    %389 = vmatpush.bf16.xpose.msra.mxu0 0
    %390 = vmatpush.bf16.xpose.msra.mxu0 0
    %391 = vmatpush.bf16.xpose.msra.mxu0 0
    %392 = vmatpush.bf16.xpose.msra.mxu0 0
    %393 = vmatpush.bf16.xpose.msra.mxu0 %v384
    %394 = vmatmul.bf16.gmra.mxu0 %v381
    %v395 = vpop.f32.mrf.mxu0
    %v396 = vadd.f32 0.0, %v395
    %v397 = vpop.f32.mrf.mxu0
    %398 = vdwg.mxu0
    %399 = vrot.lane.b32.xlu0 %v129, 112
    %v400 = vpop.permute.xlu0 %399
    %401 = vrot.lane.b32.xlu0 %v129, 80
    %v402 = vpop.permute.xlu0 %401
    %v404 = vsel %vm107, %v400, 0
    %v407 = vsel %vm107, %v402, 0
    %409 = vmatpush.bf16.xpose.msra.mxu0 0
    %410 = vmatpush.bf16.xpose.msra.mxu0 0
    %411 = vmatpush.bf16.xpose.msra.mxu0 0
    %412 = vmatpush.bf16.xpose.msra.mxu0 0
    %413 = vmatpush.bf16.xpose.msra.mxu0 0
    %414 = vmatpush.bf16.xpose.msra.mxu0 0
    %415 = vmatpush.bf16.xpose.msra.mxu0 0
    %416 = vmatpush.bf16.xpose.msra.mxu0 %v407
    %417 = vmatmul.bf16.gmra.mxu0 %v404
    %v418 = vpop.f32.mrf.mxu0
    %v419 = vadd.f32 0.0, %v418
    %v420 = vpop.f32.mrf.mxu0
    %421 = vdwg.mxu0
    %v422 = vmul.f32 %v396, 0.35355338
    %v423 = vmul.f32 %v419, 0.35355338
    %v424 = vsel %vm107, %v422, -inf
    %425 = vmax.xlane.f32.xlu0 %v424
    %v426 = vpop.xlane.xlu0 %425
    %v427 = vsel %vm107, %v423, -inf
    %428 = vmax.xlane.f32.xlu0 %v427
    %v429 = vpop.xlane.xlu0 %428
    %v430 = vsub.f32 %v422, %v426
    %v431 = vsub.f32 %v423, %v429
    %v432 = vmul.f32 %v430, 1.442695
    %v433 = vpow.pop %v432
    %v434 = vmul.f32 %v431, 1.442695
    %v435 = vpow.pop %v434
    %v436 = vsel %vm107, %v433, 0.0
    %437 = vadd.xlane.f32.xlu0 %v436
    %v438 = vpop.xlane.xlu0 %437
    %v439 = vsel %vm107, %v435, 0.0
    %440 = vadd.xlane.f32.xlu0 %v439
    %v441 = vpop.xlane.xlu0 %440
    %v442 = vrcp.pop %v438
    %v443 = vrcp.pop %v441
    %v444 = vmul.f32 %v433, %v442
    %v445 = vmul.f32 %v435, %v443
    %v446 = vpack.c.bf16 %v444, %v444
    %v447 = vpack.c.bf16 %v445, %v445
    %448 = vrot.lane.b32.xlu0 %v104, 48
    %v449 = vpop.permute.xlu0 %448
    %v451 = vsel %vm107, %v446, 0
    %v454 = vsel %vm182, %v449, 0
    %456 = vmatpush.bf16.msra.mxu0 0
    %457 = vmatpush.bf16.msra.mxu0 0
    %458 = vmatpush.bf16.msra.mxu0 0
    %459 = vmatpush.bf16.msra.mxu0 0
    %460 = vmatpush.bf16.msra.mxu0 0
    %461 = vmatpush.bf16.msra.mxu0 0
    %462 = vmatpush.bf16.msra.mxu0 0
    %463 = vmatpush.bf16.msra.mxu0 %v454
    %464 = vmatmul.bf16.gmra.mxu0 %v451
    %v465 = vpop.f32.mrf.mxu0
    %v466 = vadd.f32 0.0, %v465
    %v467 = vpop.f32.mrf.mxu0
    %468 = vdwg.mxu0
    %469 = vrot.lane.b32.xlu0 %v129, 48
    %v470 = vpop.permute.xlu0 %469
    %v472 = vsel %vm107, %v447, 0
    %v475 = vsel %vm182, %v470, 0
    %477 = vmatpush.bf16.msra.mxu0 0
    %478 = vmatpush.bf16.msra.mxu0 0
    %479 = vmatpush.bf16.msra.mxu0 0
    %480 = vmatpush.bf16.msra.mxu0 0
    %481 = vmatpush.bf16.msra.mxu0 0
    %482 = vmatpush.bf16.msra.mxu0 0
    %483 = vmatpush.bf16.msra.mxu0 0
    %484 = vmatpush.bf16.msra.mxu0 %v475
    %485 = vmatmul.bf16.gmra.mxu0 %v472
    %v486 = vpop.f32.mrf.mxu0
    %v487 = vadd.f32 0.0, %v486
    %v488 = vpop.f32.mrf.mxu0
    %489 = vdwg.mxu0
    %v490 = vpack.c.bf16 %v487, %v466
    %v492 = vsel %vm107, %v490, 0
    %v495 = vsel %vm182, %v98, 0
    %497 = vmatpush.bf16.msra.mxu0 0
    %498 = vmatpush.bf16.msra.mxu0 0
    %499 = vmatpush.bf16.msra.mxu0 0
    %500 = vmatpush.bf16.msra.mxu0 0
    %501 = vmatpush.bf16.msra.mxu0 0
    %502 = vmatpush.bf16.msra.mxu0 0
    %503 = vmatpush.bf16.msra.mxu0 0
    %504 = vmatpush.bf16.msra.mxu0 %v495
    %505 = vmatmul.bf16.gmra.mxu0 %v492
    %v506 = vpop.f32.mrf.mxu0
    %v507 = vadd.f32 0.0, %v506
    %v508 = vpop.f32.mrf.mxu0
    %v509 = vadd.f32 0.0, %v508
    %510 = vdwg.mxu0
    %v511 = vadd.f32 %v372, %v507
    %v512 = vadd.f32 %v374, %v509
    %513 = vrot.lane.b32.xlu0 %v104, 104
    %v514 = vpop.permute.xlu0 %513
    %515 = vrot.lane.b32.xlu0 %v104, 72
    %v516 = vpop.permute.xlu0 %515
    %v518 = vsel %vm107, %v514, 0
    %v521 = vsel %vm107, %v516, 0
    %523 = vmatpush.bf16.xpose.msra.mxu0 0
    %524 = vmatpush.bf16.xpose.msra.mxu0 0
    %525 = vmatpush.bf16.xpose.msra.mxu0 0
    %526 = vmatpush.bf16.xpose.msra.mxu0 0
    %527 = vmatpush.bf16.xpose.msra.mxu0 0
    %528 = vmatpush.bf16.xpose.msra.mxu0 0
    %529 = vmatpush.bf16.xpose.msra.mxu0 0
    %530 = vmatpush.bf16.xpose.msra.mxu0 %v521
    %531 = vmatmul.bf16.gmra.mxu0 %v518
    %v532 = vpop.f32.mrf.mxu0
    %v533 = vadd.f32 0.0, %v532
    %v534 = vpop.f32.mrf.mxu0
    %535 = vdwg.mxu0
    %536 = vrot.lane.b32.xlu0 %v129, 104
    %v537 = vpop.permute.xlu0 %536
    %538 = vrot.lane.b32.xlu0 %v129, 72
    %v539 = vpop.permute.xlu0 %538
    %v541 = vsel %vm107, %v537, 0
    %v544 = vsel %vm107, %v539, 0
    %546 = vmatpush.bf16.xpose.msra.mxu0 0
    %547 = vmatpush.bf16.xpose.msra.mxu0 0
    %548 = vmatpush.bf16.xpose.msra.mxu0 0
    %549 = vmatpush.bf16.xpose.msra.mxu0 0
    %550 = vmatpush.bf16.xpose.msra.mxu0 0
    %551 = vmatpush.bf16.xpose.msra.mxu0 0
    %552 = vmatpush.bf16.xpose.msra.mxu0 0
    %553 = vmatpush.bf16.xpose.msra.mxu0 %v544
    %554 = vmatmul.bf16.gmra.mxu0 %v541
    %v555 = vpop.f32.mrf.mxu0
    %v556 = vadd.f32 0.0, %v555
    %v557 = vpop.f32.mrf.mxu0
    %558 = vdwg.mxu0
    %v559 = vmul.f32 %v533, 0.35355338
    %v560 = vmul.f32 %v556, 0.35355338
    %v561 = vsel %vm107, %v559, -inf
    %562 = vmax.xlane.f32.xlu0 %v561
    %v563 = vpop.xlane.xlu0 %562
    %v564 = vsel %vm107, %v560, -inf
    %565 = vmax.xlane.f32.xlu0 %v564
    %v566 = vpop.xlane.xlu0 %565
    %v567 = vsub.f32 %v559, %v563
    %v568 = vsub.f32 %v560, %v566
    %v569 = vmul.f32 %v567, 1.442695
    %v570 = vpow.pop %v569
    %v571 = vmul.f32 %v568, 1.442695
    %v572 = vpow.pop %v571
    %v573 = vsel %vm107, %v570, 0.0
    %574 = vadd.xlane.f32.xlu0 %v573
    %v575 = vpop.xlane.xlu0 %574
    %v576 = vsel %vm107, %v572, 0.0
    %577 = vadd.xlane.f32.xlu0 %v576
    %v578 = vpop.xlane.xlu0 %577
    %v579 = vrcp.pop %v575
    %v580 = vrcp.pop %v578
    %v581 = vmul.f32 %v570, %v579
    %v582 = vmul.f32 %v572, %v580
    %v583 = vpack.c.bf16 %v581, %v581
    %v584 = vpack.c.bf16 %v582, %v582
    %585 = vrot.lane.b32.xlu0 %v104, 40
    %v586 = vpop.permute.xlu0 %585
    %v588 = vsel %vm107, %v583, 0
    %v591 = vsel %vm182, %v586, 0
    %593 = vmatpush.bf16.msra.mxu0 0
    %594 = vmatpush.bf16.msra.mxu0 0
    %595 = vmatpush.bf16.msra.mxu0 0
    %596 = vmatpush.bf16.msra.mxu0 0
    %597 = vmatpush.bf16.msra.mxu0 0
    %598 = vmatpush.bf16.msra.mxu0 0
    %599 = vmatpush.bf16.msra.mxu0 0
    %600 = vmatpush.bf16.msra.mxu0 %v591
    %601 = vmatmul.bf16.gmra.mxu0 %v588
    %v602 = vpop.f32.mrf.mxu0
    %v603 = vadd.f32 0.0, %v602
    %v604 = vpop.f32.mrf.mxu0
    %605 = vdwg.mxu0
    %606 = vrot.lane.b32.xlu0 %v129, 40
    %v607 = vpop.permute.xlu0 %606
    %v609 = vsel %vm107, %v584, 0
    %v612 = vsel %vm182, %v607, 0
    %614 = vmatpush.bf16.msra.mxu0 0
    %615 = vmatpush.bf16.msra.mxu0 0
    %616 = vmatpush.bf16.msra.mxu0 0
    %617 = vmatpush.bf16.msra.mxu0 0
    %618 = vmatpush.bf16.msra.mxu0 0
    %619 = vmatpush.bf16.msra.mxu0 0
    %620 = vmatpush.bf16.msra.mxu0 0
    %621 = vmatpush.bf16.msra.mxu0 %v612
    %622 = vmatmul.bf16.gmra.mxu0 %v609
    %v623 = vpop.f32.mrf.mxu0
    %v624 = vadd.f32 0.0, %v623
    %v625 = vpop.f32.mrf.mxu0
    %626 = vdwg.mxu0
    %v627 = vpack.c.bf16 %v624, %v603
    %v629 = vsel %vm107, %v627, 0
    %v632 = vsel %vm182, %v99, 0
    %634 = vmatpush.bf16.msra.mxu0 0
    %635 = vmatpush.bf16.msra.mxu0 0
    %636 = vmatpush.bf16.msra.mxu0 0
    %637 = vmatpush.bf16.msra.mxu0 0
    %638 = vmatpush.bf16.msra.mxu0 0
    %639 = vmatpush.bf16.msra.mxu0 0
    %640 = vmatpush.bf16.msra.mxu0 0
    %641 = vmatpush.bf16.msra.mxu0 %v632
    %642 = vmatmul.bf16.gmra.mxu0 %v629
    %v643 = vpop.f32.mrf.mxu0
    %v644 = vadd.f32 0.0, %v643
    %v645 = vpop.f32.mrf.mxu0
    %v646 = vadd.f32 0.0, %v645
    %647 = vdwg.mxu0
    %v648 = vadd.f32 %v511, %v644
    %v649 = vadd.f32 %v512, %v646
    %v650 = vld [vmem:[%s5] sm:$0x1]
    %v652 = vperm.slane %v650, 0
    %v654 = vadd.f32 %v648, %v652
    %v655 = vadd.f32 %v649, %v652
    %v656 = vadd.f32 %v55, %v654
    %v657 = vadd.f32 %v56, %v655
    %v658 = vld [vmem:[%s6] sm:$0x1]
    %v659 = vld [vmem:[%s7] sm:$0x1]
    %v660 = vsel %vm78, %v656, 0.0
    %661 = vadd.xlane.f32.xlu0 %v660
    %v662 = vpop.xlane.xlu0 %661
    %v663 = vsel %vm78, %v657, 0.0
    %664 = vadd.xlane.f32.xlu0 %v663
    %v665 = vpop.xlane.xlu0 %664
    %v666 = vrcp.pop 32.0
    %v667 = vmul.f32 32.0, %v666
    %v668 = vsub.f32 1.0, %v667
    %v669 = vmul.f32 %v666, %v668
    %v670 = vadd.f32 %v666, %v669
    %vm671 = vweird.f32 %v666
    %v672 = vsel %vm671, %v666, %v670
    %v673 = vmul.f32 %v662, %v672
    %v674 = vmul.f32 %v665, %v672
    %v675 = vsub.f32 %v656, %v673
    %v676 = vsub.f32 %v657, %v674
    %v677 = vmul.f32 %v675, %v675
    %v678 = vmul.f32 %v676, %v676
    %v679 = vsel %vm78, %v677, 0.0
    %680 = vadd.xlane.f32.xlu0 %v679
    %v681 = vpop.xlane.xlu0 %680
    %v682 = vsel %vm78, %v678, 0.0
    %683 = vadd.xlane.f32.xlu0 %v682
    %v684 = vpop.xlane.xlu0 %683
    %v685 = vmul.f32 %v681, %v672
    %v686 = vmul.f32 %v684, %v672
    %v687 = vadd.f32 %v685, 1e-06
    %v688 = vadd.f32 %v686, 1e-06
    %v689 = vrsqrt.pop %v687
    %v690 = vmul.f32 %v689, %v687
    %v691 = vmul.f32 %v690, %v689
    %v692 = vmul.f32 0.5, %v691
    %v693 = vsub.f32 1.5, %v692
    %v694 = vmul.f32 %v689, %v693
    %vm695 = vweird.f32 %v687
    %vm696 = vweird.f32 %v689
    %vm697 = vmor %vm695, %vm696
    %v698 = vsel %vm697, %v689, %v694
    %v699 = vrsqrt.pop %v688
    %v700 = vmul.f32 %v699, %v688
    %v701 = vmul.f32 %v700, %v699
    %v702 = vmul.f32 0.5, %v701
    %v703 = vsub.f32 1.5, %v702
    %v704 = vmul.f32 %v699, %v703
    %vm705 = vweird.f32 %v688
    %vm706 = vweird.f32 %v699
    %vm707 = vmor %vm705, %vm706
    %v708 = vsel %vm707, %v699, %v704
    %v709 = vmul.f32 %v675, %v698
    %v710 = vmul.f32 %v676, %v708
    %v712 = vperm.slane %v658, 0
    %v714 = vmul.f32 %v709, %v712
    %v715 = vmul.f32 %v710, %v712
    %v717 = vperm.slane %v659, 0
    %v719 = vadd.f32 %v714, %v717
    %v720 = vadd.f32 %v715, %v717
    %v721 = vpack.c.bf16 %v720, %v719
    %v722 = vld [vmem:[%s10] sm:$0xf]
    %v723 = vld [vmem:[%s10 + $0x4] sm:$0xf]
    %v724 = vld [vmem:[%s10 + $0x8] sm:$0xf]
    %v725 = vld [vmem:[%s10 + $0xc] sm:$0xf]
    %v726 = vld [vmem:[%s11] sm:$0x1]
    %v728 = vperm.slane %v726, 0
    %v734 = vunpack.c.l.b16 %v722
    %v735 = vunpack.c.l.b16 %v723
    %v736 = vunpack.c.l.b16 %v724
    %v737 = vunpack.c.l.b16 %v725
    %v738 = vpack.c.b16 %v735, %v734
    %v739 = vpack.c.b16 %v737, %v736
    %v743 = vsel %vm78, %v721, 0
    %745 = vmatpush.bf16.msra.mxu0 0
    %746 = vmatpush.bf16.msra.mxu0 0
    %747 = vmatpush.bf16.msra.mxu0 0
    %748 = vmatpush.bf16.msra.mxu0 0
    %749 = vmatpush.bf16.msra.mxu0 0
    %750 = vmatpush.bf16.msra.mxu0 0
    %751 = vmatpush.bf16.msra.mxu0 %v739
    %752 = vmatpush.bf16.msra.mxu0 %v738
    %753 = vmatmul.bf16.gmra.mxu0 %v743
    %v754 = vpop.f32.mrf.mxu0
    %v755 = vadd.f32 %v728, %v754
    %v756 = vpop.f32.mrf.mxu0
    %v757 = vadd.f32 %v728, %v756
    %758 = vdwg.mxu0
    %v759 = vmax.f32 %v755, 0.0
    %v760 = vmax.f32 %v757, 0.0
    %v761 = vpack.c.bf16 %v760, %v759
    %v762 = vld [vmem:[%s12] sm:$0xf]
    %v763 = vld [vmem:[%s12 + $0x4] sm:$0xf]
    %v764 = vld [vmem:[%s12 + $0x8] sm:$0xf]
    %v765 = vld [vmem:[%s12 + $0xc] sm:$0xf]
    %v766 = vld [vmem:[%s12 + $0x10] sm:$0xf]
    %v767 = vld [vmem:[%s12 + $0x14] sm:$0xf]
    %v768 = vld [vmem:[%s12 + $0x18] sm:$0xf]
    %v769 = vld [vmem:[%s12 + $0x1c] sm:$0xf]
    %v770 = vld [vmem:[%s13] sm:$0x1]
    %v772 = vperm.slane %v770, 0
    %v782 = vunpack.c.l.b16 %v762
    %v783 = vunpack.c.l.b16 %v763
    %v784 = vunpack.c.l.b16 %v764
    %v785 = vunpack.c.l.b16 %v765
    %v786 = vunpack.c.l.b16 %v766
    %v787 = vunpack.c.l.b16 %v767
    %v788 = vunpack.c.l.b16 %v768
    %v789 = vunpack.c.l.b16 %v769
    %v790 = vpack.c.b16 %v783, %v782
    %v791 = vpack.c.b16 %v785, %v784
    %v792 = vpack.c.b16 %v787, %v786
    %v793 = vpack.c.b16 %v789, %v788
    %vm798 = vcmask 523264
    %v800 = vsel %vm798, %v761, 0
    %802 = vmatpush.bf16.msra.mxu0 0
    %803 = vmatpush.bf16.msra.mxu0 0
    %804 = vmatpush.bf16.msra.mxu0 0
    %805 = vmatpush.bf16.msra.mxu0 0
    %806 = vmatpush.bf16.msra.mxu0 %v793
    %807 = vmatpush.bf16.msra.mxu0 %v792
    %808 = vmatpush.bf16.msra.mxu0 %v791
    %809 = vmatpush.bf16.msra.mxu0 %v790
    %810 = vmatmul.bf16.gmra.mxu0 %v800
    %v811 = vpop.f32.mrf.mxu0
    %v812 = vadd.f32 %v772, %v811
    %v813 = vpop.f32.mrf.mxu0
    %v814 = vadd.f32 %v772, %v813
    %815 = vdwg.mxu0
    %v816 = vadd.f32 %v719, %v812
    %v817 = vadd.f32 %v720, %v814
    %v818 = vld [vmem:[%s8] sm:$0x1]
    %v819 = vld [vmem:[%s9] sm:$0x1]
    %v820 = vsel %vm78, %v816, 0.0
    %821 = vadd.xlane.f32.xlu0 %v820
    %v822 = vpop.xlane.xlu0 %821
    %v823 = vsel %vm78, %v817, 0.0
    %824 = vadd.xlane.f32.xlu0 %v823
    %v825 = vpop.xlane.xlu0 %824
    %v826 = vmul.f32 %v822, %v672
    %v827 = vmul.f32 %v825, %v672
    %v828 = vsub.f32 %v816, %v826
    %v829 = vsub.f32 %v817, %v827
    %v830 = vmul.f32 %v828, %v828
    %v831 = vmul.f32 %v829, %v829
    %v832 = vsel %vm78, %v830, 0.0
    %833 = vadd.xlane.f32.xlu0 %v832
    %v834 = vpop.xlane.xlu0 %833
    %v835 = vsel %vm78, %v831, 0.0
    %836 = vadd.xlane.f32.xlu0 %v835
    %v837 = vpop.xlane.xlu0 %836
    %v838 = vmul.f32 %v834, %v672
    %v839 = vmul.f32 %v837, %v672
    %v840 = vadd.f32 %v838, 1e-06
    %v841 = vadd.f32 %v839, 1e-06
    %v842 = vrsqrt.pop %v840
    %v843 = vmul.f32 %v842, %v840
    %v844 = vmul.f32 %v843, %v842
    %v845 = vmul.f32 0.5, %v844
    %v846 = vsub.f32 1.5, %v845
    %v847 = vmul.f32 %v842, %v846
    %vm848 = vweird.f32 %v840
    %vm849 = vweird.f32 %v842
    %vm850 = vmor %vm848, %vm849
    %v851 = vsel %vm850, %v842, %v847
    %v852 = vrsqrt.pop %v841
    %v853 = vmul.f32 %v852, %v841
    %v854 = vmul.f32 %v853, %v852
    %v855 = vmul.f32 0.5, %v854
    %v856 = vsub.f32 1.5, %v855
    %v857 = vmul.f32 %v852, %v856
    %vm858 = vweird.f32 %v841
    %vm859 = vweird.f32 %v852
    %vm860 = vmor %vm858, %vm859
    %v861 = vsel %vm860, %v852, %v857
    %v862 = vmul.f32 %v828, %v851
    %v863 = vmul.f32 %v829, %v861
    %v865 = vperm.slane %v818, 0
    %v867 = vmul.f32 %v862, %v865
    %v868 = vmul.f32 %v863, %v865
    %v870 = vperm.slane %v819, 0
    %v872 = vadd.f32 %v867, %v870
    %v873 = vadd.f32 %v868, %v870
    %v874 = vpack.c.bf16 %v873, %v872
    %s875 = scalar_lea.vmem %s2, 16
    %v876 = vld [vmem:[%s875] sm:$0xf]
    %v877 = vld [vmem:[%s875 + $0x4] sm:$0xf]
    %v878 = vld [vmem:[%s875 + $0x8] sm:$0xf]
    %v879 = vld [vmem:[%s875 + $0xc] sm:$0xf]
    %s880 = scalar_lea.vmem %s3, 1
    %v881 = vld [vmem:[%s880] sm:$0x1]
    %v883 = vperm.slane %v881, 0
    %v889 = vunpack.c.l.b16 %v876
    %v890 = vunpack.c.l.b16 %v877
    %v891 = vunpack.c.l.b16 %v878
    %v892 = vunpack.c.l.b16 %v879
    %v893 = vpack.c.b16 %v890, %v889
    %v894 = vpack.c.b16 %v892, %v891
    %v898 = vsel %vm78, %v874, 0
    %900 = vmatpush.bf16.msra.mxu0 0
    %901 = vmatpush.bf16.msra.mxu0 0
    %902 = vmatpush.bf16.msra.mxu0 0
    %903 = vmatpush.bf16.msra.mxu0 0
    %904 = vmatpush.bf16.msra.mxu0 0
    %905 = vmatpush.bf16.msra.mxu0 0
    %906 = vmatpush.bf16.msra.mxu0 %v894
    %907 = vmatpush.bf16.msra.mxu0 %v893
    %908 = vmatmul.bf16.gmra.mxu0 %v898
    %v909 = vpop.f32.mrf.mxu0
    %v910 = vadd.f32 %v883, %v909
    %v911 = vpop.f32.mrf.mxu0
    %v912 = vadd.f32 %v883, %v911
    %913 = vdwg.mxu0
    %s914 = scalar_lea.vmem %s4, 16
    %v915 = vld [vmem:[%s914] sm:$0xf]
    %v916 = vld [vmem:[%s914 + $0x4] sm:$0xf]
    %v917 = vld [vmem:[%s914 + $0x8] sm:$0xf]
    %v918 = vld [vmem:[%s914 + $0xc] sm:$0xf]
    %v919 = vpack.c.bf16 %v910, %v910
    %v920 = vpack.c.bf16 %v912, %v912
    %v922 = vunpack.c.l.b16 %v919
    %v923 = vpack.c.b16 %v922, %v922
    %924 = vrot.lane.b32.xlu0 %v923, 96
    %v925 = vpop.permute.xlu0 %924
    %v927 = vsel %vm107, %v919, 0
    %v930 = vsel %vm107, %v925, 0
    %932 = vmatpush.bf16.xpose.msra.mxu0 0
    %933 = vmatpush.bf16.xpose.msra.mxu0 0
    %934 = vmatpush.bf16.xpose.msra.mxu0 0
    %935 = vmatpush.bf16.xpose.msra.mxu0 0
    %936 = vmatpush.bf16.xpose.msra.mxu0 0
    %937 = vmatpush.bf16.xpose.msra.mxu0 0
    %938 = vmatpush.bf16.xpose.msra.mxu0 0
    %939 = vmatpush.bf16.xpose.msra.mxu0 %v930
    %940 = vmatmul.bf16.gmra.mxu0 %v927
    %v941 = vpop.f32.mrf.mxu0
    %v942 = vadd.f32 0.0, %v941
    %v943 = vpop.f32.mrf.mxu0
    %944 = vdwg.mxu0
    %v946 = vunpack.c.l.b16 %v920
    %v947 = vpack.c.b16 %v946, %v946
    %948 = vrot.lane.b32.xlu0 %v947, 96
    %v949 = vpop.permute.xlu0 %948
    %v951 = vsel %vm107, %v920, 0
    %v954 = vsel %vm107, %v949, 0
    %956 = vmatpush.bf16.xpose.msra.mxu0 0
    %957 = vmatpush.bf16.xpose.msra.mxu0 0
    %958 = vmatpush.bf16.xpose.msra.mxu0 0
    %959 = vmatpush.bf16.xpose.msra.mxu0 0
    %960 = vmatpush.bf16.xpose.msra.mxu0 0
    %961 = vmatpush.bf16.xpose.msra.mxu0 0
    %962 = vmatpush.bf16.xpose.msra.mxu0 0
    %963 = vmatpush.bf16.xpose.msra.mxu0 %v954
    %964 = vmatmul.bf16.gmra.mxu0 %v951
    %v965 = vpop.f32.mrf.mxu0
    %v966 = vadd.f32 0.0, %v965
    %v967 = vpop.f32.mrf.mxu0
    %968 = vdwg.mxu0
    %v969 = vmul.f32 %v942, 0.35355338
    %v970 = vmul.f32 %v966, 0.35355338
    %v971 = vsel %vm107, %v969, -inf
    %972 = vmax.xlane.f32.xlu0 %v971
    %v973 = vpop.xlane.xlu0 %972
    %v974 = vsel %vm107, %v970, -inf
    %975 = vmax.xlane.f32.xlu0 %v974
    %v976 = vpop.xlane.xlu0 %975
    %v977 = vsub.f32 %v969, %v973
    %v978 = vsub.f32 %v970, %v976
    %v979 = vmul.f32 %v977, 1.442695
    %v980 = vpow.pop %v979
    %v981 = vmul.f32 %v978, 1.442695
    %v982 = vpow.pop %v981
    %v983 = vsel %vm107, %v980, 0.0
    %984 = vadd.xlane.f32.xlu0 %v983
    %v985 = vpop.xlane.xlu0 %984
    %v986 = vsel %vm107, %v982, 0.0
    %987 = vadd.xlane.f32.xlu0 %v986
    %v988 = vpop.xlane.xlu0 %987
    %v989 = vrcp.pop %v985
    %v990 = vrcp.pop %v988
    %v991 = vmul.f32 %v980, %v989
    %v992 = vmul.f32 %v982, %v990
    %v993 = vpack.c.bf16 %v991, %v991
    %v994 = vpack.c.bf16 %v992, %v992
    %995 = vrot.lane.b32.xlu0 %v923, 64
    %v996 = vpop.permute.xlu0 %995
    %v998 = vsel %vm107, %v993, 0
    %v1001 = vsel %vm182, %v996, 0
    %1003 = vmatpush.bf16.msra.mxu0 0
    %1004 = vmatpush.bf16.msra.mxu0 0
    %1005 = vmatpush.bf16.msra.mxu0 0
    %1006 = vmatpush.bf16.msra.mxu0 0
    %1007 = vmatpush.bf16.msra.mxu0 0
    %1008 = vmatpush.bf16.msra.mxu0 0
    %1009 = vmatpush.bf16.msra.mxu0 0
    %1010 = vmatpush.bf16.msra.mxu0 %v1001
    %1011 = vmatmul.bf16.gmra.mxu0 %v998
    %v1012 = vpop.f32.mrf.mxu0
    %v1013 = vadd.f32 0.0, %v1012
    %v1014 = vpop.f32.mrf.mxu0
    %1015 = vdwg.mxu0
    %1016 = vrot.lane.b32.xlu0 %v947, 64
    %v1017 = vpop.permute.xlu0 %1016
    %v1019 = vsel %vm107, %v994, 0
    %v1022 = vsel %vm182, %v1017, 0
    %1024 = vmatpush.bf16.msra.mxu0 0
    %1025 = vmatpush.bf16.msra.mxu0 0
    %1026 = vmatpush.bf16.msra.mxu0 0
    %1027 = vmatpush.bf16.msra.mxu0 0
    %1028 = vmatpush.bf16.msra.mxu0 0
    %1029 = vmatpush.bf16.msra.mxu0 0
    %1030 = vmatpush.bf16.msra.mxu0 0
    %1031 = vmatpush.bf16.msra.mxu0 %v1022
    %1032 = vmatmul.bf16.gmra.mxu0 %v1019
    %v1033 = vpop.f32.mrf.mxu0
    %v1034 = vadd.f32 0.0, %v1033
    %v1035 = vpop.f32.mrf.mxu0
    %1036 = vdwg.mxu0
    %v1037 = vpack.c.bf16 %v1034, %v1013
    %1038 = vrot.lane.b32.xlu0 %v923, 120
    %v1039 = vpop.permute.xlu0 %1038
    %1040 = vrot.lane.b32.xlu0 %v923, 88
    %v1041 = vpop.permute.xlu0 %1040
    %v1043 = vsel %vm107, %v1039, 0
    %v1046 = vsel %vm107, %v1041, 0
    %1048 = vmatpush.bf16.xpose.msra.mxu0 0
    %1049 = vmatpush.bf16.xpose.msra.mxu0 0
    %1050 = vmatpush.bf16.xpose.msra.mxu0 0
    %1051 = vmatpush.bf16.xpose.msra.mxu0 0
    %1052 = vmatpush.bf16.xpose.msra.mxu0 0
    %1053 = vmatpush.bf16.xpose.msra.mxu0 0
    %1054 = vmatpush.bf16.xpose.msra.mxu0 0
    %1055 = vmatpush.bf16.xpose.msra.mxu0 %v1046
    %1056 = vmatmul.bf16.gmra.mxu0 %v1043
    %v1057 = vpop.f32.mrf.mxu0
    %v1058 = vadd.f32 0.0, %v1057
    %v1059 = vpop.f32.mrf.mxu0
    %1060 = vdwg.mxu0
    %1061 = vrot.lane.b32.xlu0 %v947, 120
    %v1062 = vpop.permute.xlu0 %1061
    %1063 = vrot.lane.b32.xlu0 %v947, 88
    %v1064 = vpop.permute.xlu0 %1063
    %v1066 = vsel %vm107, %v1062, 0
    %v1069 = vsel %vm107, %v1064, 0
    %1071 = vmatpush.bf16.xpose.msra.mxu0 0
    %1072 = vmatpush.bf16.xpose.msra.mxu0 0
    %1073 = vmatpush.bf16.xpose.msra.mxu0 0
    %1074 = vmatpush.bf16.xpose.msra.mxu0 0
    %1075 = vmatpush.bf16.xpose.msra.mxu0 0
    %1076 = vmatpush.bf16.xpose.msra.mxu0 0
    %1077 = vmatpush.bf16.xpose.msra.mxu0 0
    %1078 = vmatpush.bf16.xpose.msra.mxu0 %v1069
    %1079 = vmatmul.bf16.gmra.mxu0 %v1066
    %v1080 = vpop.f32.mrf.mxu0
    %v1081 = vadd.f32 0.0, %v1080
    %v1082 = vpop.f32.mrf.mxu0
    %1083 = vdwg.mxu0
    %v1084 = vmul.f32 %v1058, 0.35355338
    %v1085 = vmul.f32 %v1081, 0.35355338
    %v1086 = vsel %vm107, %v1084, -inf
    %1087 = vmax.xlane.f32.xlu0 %v1086
    %v1088 = vpop.xlane.xlu0 %1087
    %v1089 = vsel %vm107, %v1085, -inf
    %1090 = vmax.xlane.f32.xlu0 %v1089
    %v1091 = vpop.xlane.xlu0 %1090
    %v1092 = vsub.f32 %v1084, %v1088
    %v1093 = vsub.f32 %v1085, %v1091
    %v1094 = vmul.f32 %v1092, 1.442695
    %v1095 = vpow.pop %v1094
    %v1096 = vmul.f32 %v1093, 1.442695
    %v1097 = vpow.pop %v1096
    %v1098 = vsel %vm107, %v1095, 0.0
    %1099 = vadd.xlane.f32.xlu0 %v1098
    %v1100 = vpop.xlane.xlu0 %1099
    %v1101 = vsel %vm107, %v1097, 0.0
    %1102 = vadd.xlane.f32.xlu0 %v1101
    %v1103 = vpop.xlane.xlu0 %1102
    %v1104 = vrcp.pop %v1100
    %v1105 = vrcp.pop %v1103
    %v1106 = vmul.f32 %v1095, %v1104
    %v1107 = vmul.f32 %v1097, %v1105
    %v1108 = vpack.c.bf16 %v1106, %v1106
    %v1109 = vpack.c.bf16 %v1107, %v1107
    %1110 = vrot.lane.b32.xlu0 %v923, 56
    %v1111 = vpop.permute.xlu0 %1110
    %v1113 = vsel %vm107, %v1108, 0
    %v1116 = vsel %vm182, %v1111, 0
    %1118 = vmatpush.bf16.msra.mxu0 0
    %1119 = vmatpush.bf16.msra.mxu0 0
    %1120 = vmatpush.bf16.msra.mxu0 0
    %1121 = vmatpush.bf16.msra.mxu0 0
    %1122 = vmatpush.bf16.msra.mxu0 0
    %1123 = vmatpush.bf16.msra.mxu0 0
    %1124 = vmatpush.bf16.msra.mxu0 0
    %1125 = vmatpush.bf16.msra.mxu0 %v1116
    %1126 = vmatmul.bf16.gmra.mxu0 %v1113
    %v1127 = vpop.f32.mrf.mxu0
    %v1128 = vadd.f32 0.0, %v1127
    %v1129 = vpop.f32.mrf.mxu0
    %1130 = vdwg.mxu0
    %1131 = vrot.lane.b32.xlu0 %v947, 56
    %v1132 = vpop.permute.xlu0 %1131
    %v1134 = vsel %vm107, %v1109, 0
    %v1137 = vsel %vm182, %v1132, 0
    %1139 = vmatpush.bf16.msra.mxu0 0
    %1140 = vmatpush.bf16.msra.mxu0 0
    %1141 = vmatpush.bf16.msra.mxu0 0
    %1142 = vmatpush.bf16.msra.mxu0 0
    %1143 = vmatpush.bf16.msra.mxu0 0
    %1144 = vmatpush.bf16.msra.mxu0 0
    %1145 = vmatpush.bf16.msra.mxu0 0
    %1146 = vmatpush.bf16.msra.mxu0 %v1137
    %1147 = vmatmul.bf16.gmra.mxu0 %v1134
    %v1148 = vpop.f32.mrf.mxu0
    %v1149 = vadd.f32 0.0, %v1148
    %v1150 = vpop.f32.mrf.mxu0
    %1151 = vdwg.mxu0
    %v1152 = vpack.c.bf16 %v1149, %v1128
    %v1154 = vsel %vm107, %v1152, 0
    %v1157 = vsel %vm182, %v916, 0
    %1159 = vmatpush.bf16.msra.mxu0 0
    %1160 = vmatpush.bf16.msra.mxu0 0
    %1161 = vmatpush.bf16.msra.mxu0 0
    %1162 = vmatpush.bf16.msra.mxu0 0
    %1163 = vmatpush.bf16.msra.mxu0 0
    %1164 = vmatpush.bf16.msra.mxu0 0
    %1165 = vmatpush.bf16.msra.mxu0 0
    %1166 = vmatpush.bf16.msra.mxu0 %v1157
    %1167 = vmatmul.bf16.gmra.mxu0 %v1154
    %v1168 = vpop.f32.mrf.mxu0
    %v1169 = vadd.f32 0.0, %v1168
    %v1170 = vpop.f32.mrf.mxu0
    %v1171 = vadd.f32 0.0, %v1170
    %1172 = vdwg.mxu0
    %v1174 = vsel %vm107, %v1037, 0
    %v1177 = vsel %vm182, %v915, 0
    %1179 = vmatpush.bf16.msra.mxu0 0
    %1180 = vmatpush.bf16.msra.mxu0 0
    %1181 = vmatpush.bf16.msra.mxu0 0
    %1182 = vmatpush.bf16.msra.mxu0 0
    %1183 = vmatpush.bf16.msra.mxu0 0
    %1184 = vmatpush.bf16.msra.mxu0 0
    %1185 = vmatpush.bf16.msra.mxu0 0
    %1186 = vmatpush.bf16.msra.mxu0 %v1177
    %1187 = vmatmul.bf16.gmra.mxu0 %v1174
    %v1188 = vpop.f32.mrf.mxu0
    %v1189 = vadd.f32 %v1169, %v1188
    %v1190 = vpop.f32.mrf.mxu0
    %v1191 = vadd.f32 %v1171, %v1190
    %1192 = vdwg.mxu0
    %1193 = vrot.lane.b32.xlu0 %v923, 112
    %v1194 = vpop.permute.xlu0 %1193
    %1195 = vrot.lane.b32.xlu0 %v923, 80
    %v1196 = vpop.permute.xlu0 %1195
    %v1198 = vsel %vm107, %v1194, 0
    %v1201 = vsel %vm107, %v1196, 0
    %1203 = vmatpush.bf16.xpose.msra.mxu0 0
    %1204 = vmatpush.bf16.xpose.msra.mxu0 0
    %1205 = vmatpush.bf16.xpose.msra.mxu0 0
    %1206 = vmatpush.bf16.xpose.msra.mxu0 0
    %1207 = vmatpush.bf16.xpose.msra.mxu0 0
    %1208 = vmatpush.bf16.xpose.msra.mxu0 0
    %1209 = vmatpush.bf16.xpose.msra.mxu0 0
    %1210 = vmatpush.bf16.xpose.msra.mxu0 %v1201
    %1211 = vmatmul.bf16.gmra.mxu0 %v1198
    %v1212 = vpop.f32.mrf.mxu0
    %v1213 = vadd.f32 0.0, %v1212
    %v1214 = vpop.f32.mrf.mxu0
    %1215 = vdwg.mxu0
    %1216 = vrot.lane.b32.xlu0 %v947, 112
    %v1217 = vpop.permute.xlu0 %1216
    %1218 = vrot.lane.b32.xlu0 %v947, 80
    %v1219 = vpop.permute.xlu0 %1218
    %v1221 = vsel %vm107, %v1217, 0
    %v1224 = vsel %vm107, %v1219, 0
    %1226 = vmatpush.bf16.xpose.msra.mxu0 0
    %1227 = vmatpush.bf16.xpose.msra.mxu0 0
    %1228 = vmatpush.bf16.xpose.msra.mxu0 0
    %1229 = vmatpush.bf16.xpose.msra.mxu0 0
    %1230 = vmatpush.bf16.xpose.msra.mxu0 0
    %1231 = vmatpush.bf16.xpose.msra.mxu0 0
    %1232 = vmatpush.bf16.xpose.msra.mxu0 0
    %1233 = vmatpush.bf16.xpose.msra.mxu0 %v1224
    %1234 = vmatmul.bf16.gmra.mxu0 %v1221
    %v1235 = vpop.f32.mrf.mxu0
    %v1236 = vadd.f32 0.0, %v1235
    %v1237 = vpop.f32.mrf.mxu0
    %1238 = vdwg.mxu0
    %v1239 = vmul.f32 %v1213, 0.35355338
    %v1240 = vmul.f32 %v1236, 0.35355338
    %v1241 = vsel %vm107, %v1239, -inf
    %1242 = vmax.xlane.f32.xlu0 %v1241
    %v1243 = vpop.xlane.xlu0 %1242
    %v1244 = vsel %vm107, %v1240, -inf
    %1245 = vmax.xlane.f32.xlu0 %v1244
    %v1246 = vpop.xlane.xlu0 %1245
    %v1247 = vsub.f32 %v1239, %v1243
    %v1248 = vsub.f32 %v1240, %v1246
    %v1249 = vmul.f32 %v1247, 1.442695
    %v1250 = vpow.pop %v1249
    %v1251 = vmul.f32 %v1248, 1.442695
    %v1252 = vpow.pop %v1251
    %v1253 = vsel %vm107, %v1250, 0.0
    %1254 = vadd.xlane.f32.xlu0 %v1253
    %v1255 = vpop.xlane.xlu0 %1254
    %v1256 = vsel %vm107, %v1252, 0.0
    %1257 = vadd.xlane.f32.xlu0 %v1256
    %v1258 = vpop.xlane.xlu0 %1257
    %v1259 = vrcp.pop %v1255
    %v1260 = vrcp.pop %v1258
    %v1261 = vmul.f32 %v1250, %v1259
    %v1262 = vmul.f32 %v1252, %v1260
    %v1263 = vpack.c.bf16 %v1261, %v1261
    %v1264 = vpack.c.bf16 %v1262, %v1262
    %1265 = vrot.lane.b32.xlu0 %v923, 48
    %v1266 = vpop.permute.xlu0 %1265
    %v1268 = vsel %vm107, %v1263, 0
    %v1271 = vsel %vm182, %v1266, 0
    %1273 = vmatpush.bf16.msra.mxu0 0
    %1274 = vmatpush.bf16.msra.mxu0 0
    %1275 = vmatpush.bf16.msra.mxu0 0
    %1276 = vmatpush.bf16.msra.mxu0 0
    %1277 = vmatpush.bf16.msra.mxu0 0
    %1278 = vmatpush.bf16.msra.mxu0 0
    %1279 = vmatpush.bf16.msra.mxu0 0
    %1280 = vmatpush.bf16.msra.mxu0 %v1271
    %1281 = vmatmul.bf16.gmra.mxu0 %v1268
    %v1282 = vpop.f32.mrf.mxu0
    %v1283 = vadd.f32 0.0, %v1282
    %v1284 = vpop.f32.mrf.mxu0
    %1285 = vdwg.mxu0
    %1286 = vrot.lane.b32.xlu0 %v947, 48
    %v1287 = vpop.permute.xlu0 %1286
    %v1289 = vsel %vm107, %v1264, 0
    %v1292 = vsel %vm182, %v1287, 0
    %1294 = vmatpush.bf16.msra.mxu0 0
    %1295 = vmatpush.bf16.msra.mxu0 0
    %1296 = vmatpush.bf16.msra.mxu0 0
    %1297 = vmatpush.bf16.msra.mxu0 0
    %1298 = vmatpush.bf16.msra.mxu0 0
    %1299 = vmatpush.bf16.msra.mxu0 0
    %1300 = vmatpush.bf16.msra.mxu0 0
    %1301 = vmatpush.bf16.msra.mxu0 %v1292
    %1302 = vmatmul.bf16.gmra.mxu0 %v1289
    %v1303 = vpop.f32.mrf.mxu0
    %v1304 = vadd.f32 0.0, %v1303
    %v1305 = vpop.f32.mrf.mxu0
    %1306 = vdwg.mxu0
    %v1307 = vpack.c.bf16 %v1304, %v1283
    %v1309 = vsel %vm107, %v1307, 0
    %v1312 = vsel %vm182, %v917, 0
    %1314 = vmatpush.bf16.msra.mxu0 0
    %1315 = vmatpush.bf16.msra.mxu0 0
    %1316 = vmatpush.bf16.msra.mxu0 0
    %1317 = vmatpush.bf16.msra.mxu0 0
    %1318 = vmatpush.bf16.msra.mxu0 0
    %1319 = vmatpush.bf16.msra.mxu0 0
    %1320 = vmatpush.bf16.msra.mxu0 0
    %1321 = vmatpush.bf16.msra.mxu0 %v1312
    %1322 = vmatmul.bf16.gmra.mxu0 %v1309
    %v1323 = vpop.f32.mrf.mxu0
    %v1324 = vadd.f32 0.0, %v1323
    %v1325 = vpop.f32.mrf.mxu0
    %v1326 = vadd.f32 0.0, %v1325
    %1327 = vdwg.mxu0
    %v1328 = vadd.f32 %v1189, %v1324
    %v1329 = vadd.f32 %v1191, %v1326
    %1330 = vrot.lane.b32.xlu0 %v923, 104
    %v1331 = vpop.permute.xlu0 %1330
    %1332 = vrot.lane.b32.xlu0 %v923, 72
    %v1333 = vpop.permute.xlu0 %1332
    %v1335 = vsel %vm107, %v1331, 0
    %v1338 = vsel %vm107, %v1333, 0
    %1340 = vmatpush.bf16.xpose.msra.mxu0 0
    %1341 = vmatpush.bf16.xpose.msra.mxu0 0
    %1342 = vmatpush.bf16.xpose.msra.mxu0 0
    %1343 = vmatpush.bf16.xpose.msra.mxu0 0
    %1344 = vmatpush.bf16.xpose.msra.mxu0 0
    %1345 = vmatpush.bf16.xpose.msra.mxu0 0
    %1346 = vmatpush.bf16.xpose.msra.mxu0 0
    %1347 = vmatpush.bf16.xpose.msra.mxu0 %v1338
    %1348 = vmatmul.bf16.gmra.mxu0 %v1335
    %v1349 = vpop.f32.mrf.mxu0
    %v1350 = vadd.f32 0.0, %v1349
    %v1351 = vpop.f32.mrf.mxu0
    %1352 = vdwg.mxu0
    %1353 = vrot.lane.b32.xlu0 %v947, 104
    %v1354 = vpop.permute.xlu0 %1353
    %1355 = vrot.lane.b32.xlu0 %v947, 72
    %v1356 = vpop.permute.xlu0 %1355
    %v1358 = vsel %vm107, %v1354, 0
    %v1361 = vsel %vm107, %v1356, 0
    %1363 = vmatpush.bf16.xpose.msra.mxu0 0
    %1364 = vmatpush.bf16.xpose.msra.mxu0 0
    %1365 = vmatpush.bf16.xpose.msra.mxu0 0
    %1366 = vmatpush.bf16.xpose.msra.mxu0 0
    %1367 = vmatpush.bf16.xpose.msra.mxu0 0
    %1368 = vmatpush.bf16.xpose.msra.mxu0 0
    %1369 = vmatpush.bf16.xpose.msra.mxu0 0
    %1370 = vmatpush.bf16.xpose.msra.mxu0 %v1361
    %1371 = vmatmul.bf16.gmra.mxu0 %v1358
    %v1372 = vpop.f32.mrf.mxu0
    %v1373 = vadd.f32 0.0, %v1372
    %v1374 = vpop.f32.mrf.mxu0
    %1375 = vdwg.mxu0
    %v1376 = vmul.f32 %v1350, 0.35355338
    %v1377 = vmul.f32 %v1373, 0.35355338
    %v1378 = vsel %vm107, %v1376, -inf
    %1379 = vmax.xlane.f32.xlu0 %v1378
    %v1380 = vpop.xlane.xlu0 %1379
    %v1381 = vsel %vm107, %v1377, -inf
    %1382 = vmax.xlane.f32.xlu0 %v1381
    %v1383 = vpop.xlane.xlu0 %1382
    %v1384 = vsub.f32 %v1376, %v1380
    %v1385 = vsub.f32 %v1377, %v1383
    %v1386 = vmul.f32 %v1384, 1.442695
    %v1387 = vpow.pop %v1386
    %v1388 = vmul.f32 %v1385, 1.442695
    %v1389 = vpow.pop %v1388
    %v1390 = vsel %vm107, %v1387, 0.0
    %1391 = vadd.xlane.f32.xlu0 %v1390
    %v1392 = vpop.xlane.xlu0 %1391
    %v1393 = vsel %vm107, %v1389, 0.0
    %1394 = vadd.xlane.f32.xlu0 %v1393
    %v1395 = vpop.xlane.xlu0 %1394
    %v1396 = vrcp.pop %v1392
    %v1397 = vrcp.pop %v1395
    %v1398 = vmul.f32 %v1387, %v1396
    %v1399 = vmul.f32 %v1389, %v1397
    %v1400 = vpack.c.bf16 %v1398, %v1398
    %v1401 = vpack.c.bf16 %v1399, %v1399
    %1402 = vrot.lane.b32.xlu0 %v923, 40
    %v1403 = vpop.permute.xlu0 %1402
    %v1405 = vsel %vm107, %v1400, 0
    %v1408 = vsel %vm182, %v1403, 0
    %1410 = vmatpush.bf16.msra.mxu0 0
    %1411 = vmatpush.bf16.msra.mxu0 0
    %1412 = vmatpush.bf16.msra.mxu0 0
    %1413 = vmatpush.bf16.msra.mxu0 0
    %1414 = vmatpush.bf16.msra.mxu0 0
    %1415 = vmatpush.bf16.msra.mxu0 0
    %1416 = vmatpush.bf16.msra.mxu0 0
    %1417 = vmatpush.bf16.msra.mxu0 %v1408
    %1418 = vmatmul.bf16.gmra.mxu0 %v1405
    %v1419 = vpop.f32.mrf.mxu0
    %v1420 = vadd.f32 0.0, %v1419
    %v1421 = vpop.f32.mrf.mxu0
    %1422 = vdwg.mxu0
    %1423 = vrot.lane.b32.xlu0 %v947, 40
    %v1424 = vpop.permute.xlu0 %1423
    %v1426 = vsel %vm107, %v1401, 0
    %v1429 = vsel %vm182, %v1424, 0
    %1431 = vmatpush.bf16.msra.mxu0 0
    %1432 = vmatpush.bf16.msra.mxu0 0
    %1433 = vmatpush.bf16.msra.mxu0 0
    %1434 = vmatpush.bf16.msra.mxu0 0
    %1435 = vmatpush.bf16.msra.mxu0 0
    %1436 = vmatpush.bf16.msra.mxu0 0
    %1437 = vmatpush.bf16.msra.mxu0 0
    %1438 = vmatpush.bf16.msra.mxu0 %v1429
    %1439 = vmatmul.bf16.gmra.mxu0 %v1426
    %v1440 = vpop.f32.mrf.mxu0
    %v1441 = vadd.f32 0.0, %v1440
    %v1442 = vpop.f32.mrf.mxu0
    %1443 = vdwg.mxu0
    %v1444 = vpack.c.bf16 %v1441, %v1420
    %v1446 = vsel %vm107, %v1444, 0
    %v1449 = vsel %vm182, %v918, 0
    %1451 = vmatpush.bf16.msra.mxu0 0
    %1452 = vmatpush.bf16.msra.mxu0 0
    %1453 = vmatpush.bf16.msra.mxu0 0
    %1454 = vmatpush.bf16.msra.mxu0 0
    %1455 = vmatpush.bf16.msra.mxu0 0
    %1456 = vmatpush.bf16.msra.mxu0 0
    %1457 = vmatpush.bf16.msra.mxu0 0
    %1458 = vmatpush.bf16.msra.mxu0 %v1449
    %1459 = vmatmul.bf16.gmra.mxu0 %v1446
    %v1460 = vpop.f32.mrf.mxu0
    %v1461 = vadd.f32 0.0, %v1460
    %v1462 = vpop.f32.mrf.mxu0
    %v1463 = vadd.f32 0.0, %v1462
    %1464 = vdwg.mxu0
    %v1465 = vadd.f32 %v1328, %v1461
    %v1466 = vadd.f32 %v1329, %v1463
    %s1467 = scalar_lea.vmem %s5, 1
    %v1468 = vld [vmem:[%s1467] sm:$0x1]
    %v1470 = vperm.slane %v1468, 0
    %v1472 = vadd.f32 %v1465, %v1470
    %v1473 = vadd.f32 %v1466, %v1470
    %v1474 = vadd.f32 %v872, %v1472
    %v1475 = vadd.f32 %v873, %v1473
    %s1476 = scalar_lea.vmem %s6, 1
    %v1477 = vld [vmem:[%s1476] sm:$0x1]
    %s1478 = scalar_lea.vmem %s7, 1
    %v1479 = vld [vmem:[%s1478] sm:$0x1]
    %v1480 = vsel %vm78, %v1474, 0.0
    %1481 = vadd.xlane.f32.xlu0 %v1480
    %v1482 = vpop.xlane.xlu0 %1481
    %v1483 = vsel %vm78, %v1475, 0.0
    %1484 = vadd.xlane.f32.xlu0 %v1483
    %v1485 = vpop.xlane.xlu0 %1484
    %v1486 = vmul.f32 %v1482, %v672
    %v1487 = vmul.f32 %v1485, %v672
    %v1488 = vsub.f32 %v1474, %v1486
    %v1489 = vsub.f32 %v1475, %v1487
    %v1490 = vmul.f32 %v1488, %v1488
    %v1491 = vmul.f32 %v1489, %v1489
    %v1492 = vsel %vm78, %v1490, 0.0
    %1493 = vadd.xlane.f32.xlu0 %v1492
    %v1494 = vpop.xlane.xlu0 %1493
    %v1495 = vsel %vm78, %v1491, 0.0
    %1496 = vadd.xlane.f32.xlu0 %v1495
    %v1497 = vpop.xlane.xlu0 %1496
    %v1498 = vmul.f32 %v1494, %v672
    %v1499 = vmul.f32 %v1497, %v672
    %v1500 = vadd.f32 %v1498, 1e-06
    %v1501 = vadd.f32 %v1499, 1e-06
    %v1502 = vrsqrt.pop %v1500
    %v1503 = vmul.f32 %v1502, %v1500
    %v1504 = vmul.f32 %v1503, %v1502
    %v1505 = vmul.f32 0.5, %v1504
    %v1506 = vsub.f32 1.5, %v1505
    %v1507 = vmul.f32 %v1502, %v1506
    %vm1508 = vweird.f32 %v1500
    %vm1509 = vweird.f32 %v1502
    %vm1510 = vmor %vm1508, %vm1509
    %v1511 = vsel %vm1510, %v1502, %v1507
    %v1512 = vrsqrt.pop %v1501
    %v1513 = vmul.f32 %v1512, %v1501
    %v1514 = vmul.f32 %v1513, %v1512
    %v1515 = vmul.f32 0.5, %v1514
    %v1516 = vsub.f32 1.5, %v1515
    %v1517 = vmul.f32 %v1512, %v1516
    %vm1518 = vweird.f32 %v1501
    %vm1519 = vweird.f32 %v1512
    %vm1520 = vmor %vm1518, %vm1519
    %v1521 = vsel %vm1520, %v1512, %v1517
    %v1522 = vmul.f32 %v1488, %v1511
    %v1523 = vmul.f32 %v1489, %v1521
    %v1525 = vperm.slane %v1477, 0
    %v1527 = vmul.f32 %v1522, %v1525
    %v1528 = vmul.f32 %v1523, %v1525
    %v1530 = vperm.slane %v1479, 0
    %v1532 = vadd.f32 %v1527, %v1530
    %v1533 = vadd.f32 %v1528, %v1530
    %v1534 = vpack.c.bf16 %v1533, %v1532
    %s1535 = scalar_lea.vmem %s10, 16
    %v1536 = vld [vmem:[%s1535] sm:$0xf]
    %v1537 = vld [vmem:[%s1535 + $0x4] sm:$0xf]
    %v1538 = vld [vmem:[%s1535 + $0x8] sm:$0xf]
    %v1539 = vld [vmem:[%s1535 + $0xc] sm:$0xf]
    %s1540 = scalar_lea.vmem %s11, 1
    %v1541 = vld [vmem:[%s1540] sm:$0x1]
    %v1543 = vperm.slane %v1541, 0
    %v1549 = vunpack.c.l.b16 %v1536
    %v1550 = vunpack.c.l.b16 %v1537
    %v1551 = vunpack.c.l.b16 %v1538
    %v1552 = vunpack.c.l.b16 %v1539
    %v1553 = vpack.c.b16 %v1550, %v1549
    %v1554 = vpack.c.b16 %v1552, %v1551
    %v1558 = vsel %vm78, %v1534, 0
    %1560 = vmatpush.bf16.msra.mxu0 0
    %1561 = vmatpush.bf16.msra.mxu0 0
    %1562 = vmatpush.bf16.msra.mxu0 0
    %1563 = vmatpush.bf16.msra.mxu0 0
    %1564 = vmatpush.bf16.msra.mxu0 0
    %1565 = vmatpush.bf16.msra.mxu0 0
    %1566 = vmatpush.bf16.msra.mxu0 %v1554
    %1567 = vmatpush.bf16.msra.mxu0 %v1553
    %1568 = vmatmul.bf16.gmra.mxu0 %v1558
    %v1569 = vpop.f32.mrf.mxu0
    %v1570 = vadd.f32 %v1543, %v1569
    %v1571 = vpop.f32.mrf.mxu0
    %v1572 = vadd.f32 %v1543, %v1571
    %1573 = vdwg.mxu0
    %v1574 = vmax.f32 %v1570, 0.0
    %v1575 = vmax.f32 %v1572, 0.0
    %v1576 = vpack.c.bf16 %v1575, %v1574
    %s1577 = scalar_lea.vmem %s12, 32
    %v1578 = vld [vmem:[%s1577] sm:$0xf]
    %v1579 = vld [vmem:[%s1577 + $0x4] sm:$0xf]
    %v1580 = vld [vmem:[%s1577 + $0x8] sm:$0xf]
    %v1581 = vld [vmem:[%s1577 + $0xc] sm:$0xf]
    %v1582 = vld [vmem:[%s1577 + $0x10] sm:$0xf]
    %v1583 = vld [vmem:[%s1577 + $0x14] sm:$0xf]
    %v1584 = vld [vmem:[%s1577 + $0x18] sm:$0xf]
    %v1585 = vld [vmem:[%s1577 + $0x1c] sm:$0xf]
    %s1586 = scalar_lea.vmem %s13, 1
    %v1587 = vld [vmem:[%s1586] sm:$0x1]
    %v1589 = vperm.slane %v1587, 0
    %v1599 = vunpack.c.l.b16 %v1578
    %v1600 = vunpack.c.l.b16 %v1579
    %v1601 = vunpack.c.l.b16 %v1580
    %v1602 = vunpack.c.l.b16 %v1581
    %v1603 = vunpack.c.l.b16 %v1582
    %v1604 = vunpack.c.l.b16 %v1583
    %v1605 = vunpack.c.l.b16 %v1584
    %v1606 = vunpack.c.l.b16 %v1585
    %v1607 = vpack.c.b16 %v1600, %v1599
    %v1608 = vpack.c.b16 %v1602, %v1601
    %v1609 = vpack.c.b16 %v1604, %v1603
    %v1610 = vpack.c.b16 %v1606, %v1605
    %v1616 = vsel %vm798, %v1576, 0
    %1618 = vmatpush.bf16.msra.mxu0 0
    %1619 = vmatpush.bf16.msra.mxu0 0
    %1620 = vmatpush.bf16.msra.mxu0 0
    %1621 = vmatpush.bf16.msra.mxu0 0
    %1622 = vmatpush.bf16.msra.mxu0 %v1610
    %1623 = vmatpush.bf16.msra.mxu0 %v1609
    %1624 = vmatpush.bf16.msra.mxu0 %v1608
    %1625 = vmatpush.bf16.msra.mxu0 %v1607
    %1626 = vmatmul.bf16.gmra.mxu0 %v1616
    %v1627 = vpop.f32.mrf.mxu0
    %v1628 = vadd.f32 %v1589, %v1627
    %v1629 = vpop.f32.mrf.mxu0
    %v1630 = vadd.f32 %v1589, %v1629
    %1631 = vdwg.mxu0
    %v1632 = vadd.f32 %v1532, %v1628
    %v1633 = vadd.f32 %v1533, %v1630
    %s1634 = scalar_lea.vmem %s8, 1
    %v1635 = vld [vmem:[%s1634] sm:$0x1]
    %s1636 = scalar_lea.vmem %s9, 1
    %v1637 = vld [vmem:[%s1636] sm:$0x1]
    %v1638 = vsel %vm78, %v1632, 0.0
    %1639 = vadd.xlane.f32.xlu0 %v1638
    %v1640 = vpop.xlane.xlu0 %1639
    %v1641 = vsel %vm78, %v1633, 0.0
    %1642 = vadd.xlane.f32.xlu0 %v1641
    %v1643 = vpop.xlane.xlu0 %1642
    %v1644 = vmul.f32 %v1640, %v672
    %v1645 = vmul.f32 %v1643, %v672
    %v1646 = vsub.f32 %v1632, %v1644
    %v1647 = vsub.f32 %v1633, %v1645
    %v1648 = vmul.f32 %v1646, %v1646
    %v1649 = vmul.f32 %v1647, %v1647
    %v1650 = vsel %vm78, %v1648, 0.0
    %1651 = vadd.xlane.f32.xlu0 %v1650
    %v1652 = vpop.xlane.xlu0 %1651
    %v1653 = vsel %vm78, %v1649, 0.0
    %1654 = vadd.xlane.f32.xlu0 %v1653
    %v1655 = vpop.xlane.xlu0 %1654
    %v1656 = vmul.f32 %v1652, %v672
    %v1657 = vmul.f32 %v1655, %v672
    %v1658 = vadd.f32 %v1656, 1e-06
    %v1659 = vadd.f32 %v1657, 1e-06
    %v1660 = vrsqrt.pop %v1658
    %v1661 = vmul.f32 %v1660, %v1658
    %v1662 = vmul.f32 %v1661, %v1660
    %v1663 = vmul.f32 0.5, %v1662
    %v1664 = vsub.f32 1.5, %v1663
    %v1665 = vmul.f32 %v1660, %v1664
    %vm1666 = vweird.f32 %v1658
    %vm1667 = vweird.f32 %v1660
    %vm1668 = vmor %vm1666, %vm1667
    %v1669 = vsel %vm1668, %v1660, %v1665
    %v1670 = vrsqrt.pop %v1659
    %v1671 = vmul.f32 %v1670, %v1659
    %v1672 = vmul.f32 %v1671, %v1670
    %v1673 = vmul.f32 0.5, %v1672
    %v1674 = vsub.f32 1.5, %v1673
    %v1675 = vmul.f32 %v1670, %v1674
    %vm1676 = vweird.f32 %v1659
    %vm1677 = vweird.f32 %v1670
    %vm1678 = vmor %vm1676, %vm1677
    %v1679 = vsel %vm1678, %v1670, %v1675
    %v1680 = vmul.f32 %v1646, %v1669
    %v1681 = vmul.f32 %v1647, %v1679
    %v1683 = vperm.slane %v1635, 0
    %v1685 = vmul.f32 %v1680, %v1683
    %v1686 = vmul.f32 %v1681, %v1683
    %v1688 = vperm.slane %v1637, 0
    %v1690 = vadd.f32 %v1685, %v1688
    %v1691 = vadd.f32 %v1686, %v1688
    %1692 = vst.msk [vmem:[#allocation2] sm:$0xff] %vm78, %v1690
    %1693 = vst.msk [vmem:[#allocation2 + $0x8] sm:$0xff] %vm78, %v1691
    // Predicated region
    $region58: #{encoder_forward.1} parent=1 // pred_check
      _
    $region59: #{encoder_forward.1} parent=1 // pred_check_branch
      %1695 = sbr.rel (0) target = $region61
    $region60: #{encoder_forward.1} parent=1 // pred_region
      %1697 = vsyncadd [#allocation3], 0
      %s1698 = sshll.u32 [#allocation2], 4
      %s1699 = int_to_ptr.vmem [resolvable:$true] %s1698
      %s1700 = sshll.u32 %s14, 4
      %s1701 = int_to_ptr.hbm [resolvable:$true] %s1700
      %1706 = dma.vmem_to_hbm [thread:$0]  %s1699, 256, %s1701, [#allocation3], 128, 128, 8
    $region61: #{encoder_forward.1} parent=1 // pred_fallthru
      _
    // Predicated region
    $region62: #{encoder_forward.1} parent=1 // pred_check
      _
    $region63: #{encoder_forward.1} parent=1 // pred_check_branch
      %1708 = sbr.rel (0) target = $region65
    $region64: #{encoder_forward.1} parent=1 // pred_region
      %1710 = dma.done [#allocation3], 256
    $region65: #{encoder_forward.1} parent=1 // pred_fallthru
      _
    %1711 = vsyncpa [#allocation3], 1

</llo_original>
